<compile_context>
chip_gen: v7x
topology: tpu7x:2x2x1
jax: 0.10.0
libtpu: 0.0.40
codegen_flags: <defaults>
</compile_context>

<pallas_src>
import numpy as np
import jax
import jax.numpy as jnp
from jax import lax
from jax.experimental import pallas as pl
from jax.experimental.pallas import tpu as pltpu

LANES = 128
SUBLANE_BF16 = 16
_EPS = 1e-5


def _round_up(n, m):
    return ((n + m - 1) // m) * m


def _out_hw(size, k, stride, pad):
    return (size + 2 * pad - k) // stride + 1


# ----------------------------------------------------------------------------
# Pallas kernel: the whole FeatureCNN forward (3 fused conv+BN+ReLU layers)
# ----------------------------------------------------------------------------
def _feature_cnn_kernel(p1_ref, w1_ref, b1_ref,
                        s2_ref, w2_ref, b2_ref,
                        s3_ref, w3_ref, b3_ref, o_ref):
    # ---- layer 1: im2col patches @ BN-folded weights, +bias, ReLU ----------
    h1 = jnp.dot(p1_ref[...], w1_ref[...], preferred_element_type=jnp.float32)
    h1 = jnp.maximum(h1 + b1_ref[...], 0.0).astype(jnp.bfloat16)     # [M1p, 32]

    # ---- layer 2 ------------------------------------------------------------
    # One stacked gather matmul pulls every (tap, output-pixel) row of h1 in a
    # single MXU pass; then nine small [M2p,Cin]@[Cin,Cout] tap contractions.
    m2p = s2_ref.shape[0] // 9
    g2 = jnp.dot(s2_ref[...], h1, preferred_element_type=jnp.float32)
    g2 = g2.astype(jnp.bfloat16)                                      # [9*M2p, 32]
    acc2 = jnp.zeros((m2p, w2_ref.shape[2]), jnp.float32)
    for t in range(9):                                                # unrolled
        acc2 = acc2 + jnp.dot(g2[t * m2p:(t + 1) * m2p, :], w2_ref[t],
                              preferred_element_type=jnp.float32)
    h2 = jnp.maximum(acc2 + b2_ref[...], 0.0).astype(jnp.bfloat16)    # [M2p, 64]

    # ---- layer 3 ------------------------------------------------------------
    m3p = s3_ref.shape[0] // 9
    g3 = jnp.dot(s3_ref[...], h2, preferred_element_type=jnp.float32)
    g3 = g3.astype(jnp.bfloat16)                                      # [9*M3p, 64]
    acc3 = jnp.zeros((m3p, w3_ref.shape[2]), jnp.float32)
    for t in range(9):
        acc3 = acc3 + jnp.dot(g3[t * m3p:(t + 1) * m3p, :], w3_ref[t],
                              preferred_element_type=jnp.float32)
    o_ref[...] = jnp.maximum(acc3 + b3_ref[...], 0.0).astype(o_ref.dtype)
    # TODO(synk): the 9-tap weight loops could collapse further into one
    #             K-concat matmul per layer ([M, 9*Cin] @ [9*Cin, Cout]) via an
    #             in-kernel relayout of g2/g3 (or a dot_general contracting
    #             over (tap, cin), MRB-friendly on v7x); kept as a short loop
    #             of tile-aligned matmuls to guarantee clean Mosaic lowering.
    # TODO(synk): Dropout(p=0.2) is identity at inference; not applied here.


def _fused_call(p1, w1m, b1, s2, w2t, b2, s3, w3t, b3):
    m3p = s3.shape[0] // 9
    cout = b3.shape[1]
    vmem = pl.BlockSpec(memory_space=pltpu.MemorySpace.VMEM)
    # No grid: the whole problem (<0.5 MiB of bf16 operands) runs as a single
    # invocation with single-buffered VMEM operands -- nothing to pipeline.
    return pl.pallas_call(
        _feature_cnn_kernel,
        out_shape=jax.ShapeDtypeStruct((m3p, cout), jnp.float32),
        in_specs=[vmem] * 9,
        out_specs=vmem,
    )(p1, w1m, b1, s2, w2t, b2, s3, w3t, b3)
    # TODO(synk): if this runs every PPO step, keep s2/w2t/s3/w3t VMEM-resident
    #             across calls (cross-call semaphore/VMEM futures) instead of
    #             re-DMAing ~0.3 MB of constants per call.
    # TODO(synk): selection matrices grow O(N^2) with batch; for large PPO
    #             batches build them per-image (block-diagonal) and add a
    #             batched grid axis marked "parallel" (2 TensorCores on v7x).


# ----------------------------------------------------------------------------
# Host-side glue (plain JAX / numpy, all static)
# ----------------------------------------------------------------------------
def _im2col(x, kh, kw, stride, pad):
    # x: NCHW float32 -> patches [N*Hout*Wout, C*kh*kw], K ordered (C, kh, kw)
    N, C, H, W = x.shape
    xp = jnp.pad(x, ((0, 0), (0, 0), (pad, pad), (pad, pad)))
    Hout = (H + 2 * pad - kh) // stride + 1
    Wout = (W + 2 * pad - kw) // stride + 1
    cols = []
    for ki in range(kh):
        for kj in range(kw):
            cols.append(
                xp[:, :, ki:ki + stride * Hout:stride,
                          kj:kj + stride * Wout:stride])     # [N,C,Hout,Wout]
    cols = jnp.stack(cols, axis=0).reshape(kh, kw, N, C, Hout, Wout)
    cols = cols.transpose(2, 4, 5, 3, 0, 1)                  # N,Ho,Wo,C,kh,kw
    return cols.reshape(N * Hout * Wout, C * kh * kw), Hout, Wout


def _selection_stack(N, hin, win, k, stride, pad, m_in_pad, m_out_pad):
    """Static 0/1 gather matrix, taps stacked along rows (tap-major):
       S[t*m_out_pad + m, r] = 1 iff output pixel m, tap t reads h-row r
       (rows for out-of-bounds taps stay zero -> implicit zero padding)."""
    hout, wout = _out_hw(hin, k, stride, pad), _out_hw(win, k, stride, pad)
    S = np.zeros((k * k * m_out_pad, m_in_pad), np.float32)
    for ki in range(k):
        for kj in range(k):
            t = ki * k + kj
            for n in range(N):
                for oh in range(hout):
                    ih = oh * stride - pad + ki
                    if ih < 0 or ih >= hin:
                        continue
                    for ow in range(wout):
                        iw = ow * stride - pad + kj
                        if iw < 0 or iw >= win:
                            continue
                        m = (n * hout + oh) * wout + ow
                        r = (n * hin + ih) * win + iw
                        S[t * m_out_pad + m, r] = 1.0
    return jnp.asarray(S, dtype=jnp.bfloat16)        # 0/1 are exact in bf16


def _fold_bn(p, eps=_EPS):
    scale = p["gamma"] / jnp.sqrt(p["var"] + eps)             # [Cout]
    bias = p["beta"] + scale * (p["b"] - p["mean"])           # [Cout]
    return scale, bias


def _tap_weights(w, scale):
    # w: [Cout, Cin, k, k] -> [k*k, Cin, Cout] with BN scale folded, bf16.
    Cout, Cin, kh, kw = w.shape
    wt = jnp.transpose(w, (2, 3, 1, 0)).reshape(kh * kw, Cin, Cout)
    return (wt * scale[None, None, :]).astype(jnp.bfloat16)


def feature_cnn_forward(x, params, eps=_EPS):
    """x: NCHW float32. Returns [N, 128*H3*W3] (matches torch nn.Flatten)."""
    N = x.shape[0]

    # --------------- layer 1: host im2col, K padded to 128 lanes, bf16 ------
    w1 = params["l1"]["w"]
    c1 = w1.shape[0]
    p1, h1s, w1s = _im2col(x, 5, 5, stride=2, pad=2)          # [M1, 100]
    m1, k1 = p1.shape
    m1p, k1p = _round_up(m1, SUBLANE_BF16), _round_up(k1, LANES)
    p1 = jnp.pad(p1, ((0, m1p - m1), (0, k1p - k1))).astype(jnp.bfloat16)
    scale1, bias1 = _fold_bn(params["l1"], eps)
    w1m = w1.reshape(c1, k1).T * scale1[None, :]              # [100, 32]
    w1m = jnp.pad(w1m, ((0, k1p - k1), (0, 0))).astype(jnp.bfloat16)
    b1 = bias1.reshape(1, c1)                                 # f32, [1, 32]

    # --------------- layer 2: stacked in-kernel gather + tap weights --------
    w2 = params["l2"]["w"]
    c2 = w2.shape[0]
    h2s, w2s = _out_hw(h1s, 3, 2, 1), _out_hw(w1s, 3, 2, 1)
    m2 = N * h2s * w2s
    m2p = _round_up(m2, SUBLANE_BF16)
    s2 = _selection_stack(N, h1s, w1s, 3, 2, 1, m1p, m2p)     # [9*m2p, m1p]
    scale2, bias2 = _fold_bn(params["l2"], eps)
    w2t = _tap_weights(w2, scale2)                            # [9, 32, 64]
    b2 = bias2.reshape(1, c2)                                 # f32, [1, 64]

    # --------------- layer 3 -------------------------------------------------
    w3 = params["l3"]["w"]
    c3 = w3.shape[0]
    h3s, w3s = _out_hw(h2s, 3, 2, 1), _out_hw(w2s, 3, 2, 1)
    m3 = N * h3s * w3s
    m3p = _round_up(m3, SUBLANE_BF16)
    s3 = _selection_stack(N, h2s, w2s, 3, 2, 1, m2p, m3p)     # [9*m3p, m2p]
    scale3, bias3 = _fold_bn(params["l3"], eps)
    w3t = _tap_weights(w3, scale3)                            # [9, 64, 128]
    b3 = bias3.reshape(1, c3)                                 # f32, [1, 128]

    out = _fused_call(p1, w1m, b1, s2, w2t, b2, s3, w3t, b3)  # [m3p, 128]
    out = out[:m3, :c3]                                       # drop row pad
    # single NHWC -> NCHW transpose before flatten (torch Flatten semantics)
    return out.reshape(N, h3s, w3s, c3).transpose(0, 3, 1, 2).reshape(N, -1)


# ----------------------------------------------------------------------------
# Deterministic parameter init (synthetic; mirrors module shapes)
# ----------------------------------------------------------------------------
def init_params(key, in_ch):
    shapes = [
        (32, in_ch, 5, 5),
        (64, 32, 3, 3),
        (128, 64, 3, 3),
    ]
    params = {}
    for i, wshape in enumerate(shapes):
        key, kw_, kb_, kg_, kbt_, km_, kv_ = jax.random.split(key, 7)
        cout, cin, kh, kw = wshape
        fan_in = cin * kh * kw
        params[f"l{i+1}"] = {
            "w": jax.random.normal(kw_, wshape, jnp.float32) / jnp.sqrt(fan_in),
            "b": jax.random.normal(kb_, (cout,), jnp.float32) * 0.1,
            "gamma": 1.0 + 0.1 * jax.random.normal(kg_, (cout,), jnp.float32),
            "beta": 0.1 * jax.random.normal(kbt_, (cout,), jnp.float32),
            "mean": 0.1 * jax.random.normal(km_, (cout,), jnp.float32),
            "var": 1.0 + 0.1 * jnp.abs(jax.random.normal(kv_, (cout,),
                                                         jnp.float32)),
        }
    return params


# ----------------------------------------------------------------------------
# Pure-JAX reference (lax.conv, f32) for a correctness check
# ----------------------------------------------------------------------------
def _reference_forward(x, params, eps=_EPS):
    h = x
    for layer, (stride, pad) in zip(("l1", "l2", "l3"),
                                    ((2, 2), (2, 1), (2, 1))):
        p = params[layer]
        h = lax.conv_general_dilated(
            h, p["w"], window_strides=(stride, stride),
            padding=[(pad, pad), (pad, pad)],
            dimension_numbers=("NCHW", "OIHW", "NCHW"))
        h = h + p["b"][None, :, None, None]
        inv = 1.0 / jnp.sqrt(p["var"] + eps)
        h = (h - p["mean"][None, :, None, None]) * \
            (p["gamma"] * inv)[None, :, None, None] + \
            p["beta"][None, :, None, None]
        h = jnp.maximum(h, 0.0)
    return h.reshape(h.shape[0], -1)


if __name__ == "__main__":
    key = jax.random.PRNGKey(0)
    k_x, k_p = jax.random.split(key)

    N, C, H, W = 2, 4, 16, 16          # input_dim=(4,16,16), batch=2
    x = jax.random.normal(k_x, (N, C, H, W), jnp.float32)
    params = init_params(k_p, C)

    out = jax.block_until_ready(feature_cnn_forward(x, params))
    ref = jax.block_until_ready(_reference_forward(x, params))

    assert out.shape == (N, 128 * (H // 8) * (W // 8)), out.shape
    max_err = float(jnp.max(jnp.abs(out - ref)))
    # bf16 operands (f32 accumulate) vs f32 reference -> loosened tolerance.
    assert jnp.allclose(out, ref, atol=7e-2, rtol=3e-2), max_err

    print("KERNEL_OK")
</pallas_src>

<mosaic_0001>
module attributes {stable_mosaic.version = 11 : i64} {
  func.func @_feature_cnn_kernel(%arg0: memref<128x128xbf16, #tpu.memory_space<vmem>>, %arg1: memref<128x32xbf16, #tpu.memory_space<vmem>>, %arg2: memref<1x32xf32, #tpu.memory_space<vmem>>, %arg3: memref<288x128xbf16, #tpu.memory_space<vmem>>, %arg4: memref<9x32x64xbf16, #tpu.memory_space<vmem>>, %arg5: memref<1x64xf32, #tpu.memory_space<vmem>>, %arg6: memref<144x32xbf16, #tpu.memory_space<vmem>>, %arg7: memref<9x64x128xbf16, #tpu.memory_space<vmem>>, %arg8: memref<1x128xf32, #tpu.memory_space<vmem>>, %arg9: memref<16x128xf32, #tpu.memory_space<vmem>>) attributes {dimension_semantics = [], scalar_prefetch = 0 : i64, scratch_operands = 0 : i64, tpu.core_type = #tpu.core_type<tc>} {
    %c0 = arith.constant 0 : index
    %c0_0 = arith.constant 0 : index
    %0 = vector.load %arg0[%c0, %c0_0] : memref<128x128xbf16, #tpu.memory_space<vmem>>, vector<128x128xbf16>
    %c0_1 = arith.constant 0 : index
    %c0_2 = arith.constant 0 : index
    %1 = vector.load %arg1[%c0_1, %c0_2] : memref<128x32xbf16, #tpu.memory_space<vmem>>, vector<128x32xbf16>
    %cst = arith.constant dense<0.000000e+00> : vector<128x32xf32>
    %2 = tpu.matmul %0, %1, %cst {dimension_numbers = #tpu.dot_dimension_numbers<[1], [0], [0], [1], [0, 0, 1, 1], [], []>} : vector<128x128xbf16>, vector<128x32xbf16>, vector<128x32xf32> -> vector<128x32xf32>
    %c0_3 = arith.constant 0 : index
    %c0_4 = arith.constant 0 : index
    %3 = vector.load %arg2[%c0_3, %c0_4] : memref<1x32xf32, #tpu.memory_space<vmem>>, vector<1x32xf32>
    %4 = vector.broadcast %3 : vector<1x32xf32> to vector<128x32xf32>
    %5 = arith.addf %2, %4 : vector<128x32xf32>
    %cst_5 = arith.constant 0.000000e+00 : f32
    %6 = vector.broadcast %cst_5 : f32 to vector<128x32xf32>
    %7 = arith.maximumf %5, %6 : vector<128x32xf32>
    %8 = arith.truncf %7 : vector<128x32xf32> to vector<128x32xbf16>
    %c0_6 = arith.constant 0 : index
    %c0_7 = arith.constant 0 : index
    %9 = vector.load %arg3[%c0_6, %c0_7] : memref<288x128xbf16, #tpu.memory_space<vmem>>, vector<288x128xbf16>
    %cst_8 = arith.constant dense<0.000000e+00> : vector<288x32xf32>
    %10 = tpu.matmul %9, %8, %cst_8 {dimension_numbers = #tpu.dot_dimension_numbers<[1], [0], [0], [1], [0, 0, 1, 1], [], []>} : vector<288x128xbf16>, vector<128x32xbf16>, vector<288x32xf32> -> vector<288x32xf32>
    %11 = arith.truncf %10 : vector<288x32xf32> to vector<288x32xbf16>
    %cst_9 = arith.constant 0.000000e+00 : f32
    %12 = vector.broadcast %cst_9 : f32 to vector<32x64xf32>
    %13 = vector.extract_strided_slice %11 {offsets = [0, 0], sizes = [32, 32], strides = [1, 1]} : vector<288x32xbf16> to vector<32x32xbf16>
    %c0_10 = arith.constant 0 : index
    %c0_11 = arith.constant 0 : index
    %c0_12 = arith.constant 0 : index
    %14 = vector.load %arg4[%c0_10, %c0_11, %c0_12] : memref<9x32x64xbf16, #tpu.memory_space<vmem>>, vector<1x32x64xbf16>
    %15 = vector.shape_cast %14 : vector<1x32x64xbf16> to vector<32x64xbf16>
    %cst_13 = arith.constant dense<0.000000e+00> : vector<32x64xf32>
    %16 = tpu.matmul %13, %15, %cst_13 {dimension_numbers = #tpu.dot_dimension_numbers<[1], [0], [0], [1], [0, 0, 1, 1], [], []>} : vector<32x32xbf16>, vector<32x64xbf16>, vector<32x64xf32> -> vector<32x64xf32>
    %17 = arith.addf %12, %16 : vector<32x64xf32>
    %18 = vector.extract_strided_slice %11 {offsets = [32, 0], sizes = [32, 32], strides = [1, 1]} : vector<288x32xbf16> to vector<32x32xbf16>
    %c1 = arith.constant 1 : index
    %c0_14 = arith.constant 0 : index
    %c0_15 = arith.constant 0 : index
    %19 = vector.load %arg4[%c1, %c0_14, %c0_15] : memref<9x32x64xbf16, #tpu.memory_space<vmem>>, vector<1x32x64xbf16>
    %20 = vector.shape_cast %19 : vector<1x32x64xbf16> to vector<32x64xbf16>
    %cst_16 = arith.constant dense<0.000000e+00> : vector<32x64xf32>
    %21 = tpu.matmul %18, %20, %cst_16 {dimension_numbers = #tpu.dot_dimension_numbers<[1], [0], [0], [1], [0, 0, 1, 1], [], []>} : vector<32x32xbf16>, vector<32x64xbf16>, vector<32x64xf32> -> vector<32x64xf32>
    %22 = arith.addf %17, %21 : vector<32x64xf32>
    %23 = vector.extract_strided_slice %11 {offsets = [64, 0], sizes = [32, 32], strides = [1, 1]} : vector<288x32xbf16> to vector<32x32xbf16>
    %c2 = arith.constant 2 : index
    %c0_17 = arith.constant 0 : index
    %c0_18 = arith.constant 0 : index
    %24 = vector.load %arg4[%c2, %c0_17, %c0_18] : memref<9x32x64xbf16, #tpu.memory_space<vmem>>, vector<1x32x64xbf16>
    %25 = vector.shape_cast %24 : vector<1x32x64xbf16> to vector<32x64xbf16>
    %cst_19 = arith.constant dense<0.000000e+00> : vector<32x64xf32>
    %26 = tpu.matmul %23, %25, %cst_19 {dimension_numbers = #tpu.dot_dimension_numbers<[1], [0], [0], [1], [0, 0, 1, 1], [], []>} : vector<32x32xbf16>, vector<32x64xbf16>, vector<32x64xf32> -> vector<32x64xf32>
    %27 = arith.addf %22, %26 : vector<32x64xf32>
    %28 = vector.extract_strided_slice %11 {offsets = [96, 0], sizes = [32, 32], strides = [1, 1]} : vector<288x32xbf16> to vector<32x32xbf16>
    %c3 = arith.constant 3 : index
    %c0_20 = arith.constant 0 : index
    %c0_21 = arith.constant 0 : index
    %29 = vector.load %arg4[%c3, %c0_20, %c0_21] : memref<9x32x64xbf16, #tpu.memory_space<vmem>>, vector<1x32x64xbf16>
    %30 = vector.shape_cast %29 : vector<1x32x64xbf16> to vector<32x64xbf16>
    %cst_22 = arith.constant dense<0.000000e+00> : vector<32x64xf32>
    %31 = tpu.matmul %28, %30, %cst_22 {dimension_numbers = #tpu.dot_dimension_numbers<[1], [0], [0], [1], [0, 0, 1, 1], [], []>} : vector<32x32xbf16>, vector<32x64xbf16>, vector<32x64xf32> -> vector<32x64xf32>
    %32 = arith.addf %27, %31 : vector<32x64xf32>
    %33 = vector.extract_strided_slice %11 {offsets = [128, 0], sizes = [32, 32], strides = [1, 1]} : vector<288x32xbf16> to vector<32x32xbf16>
    %c4 = arith.constant 4 : index
    %c0_23 = arith.constant 0 : index
    %c0_24 = arith.constant 0 : index
    %34 = vector.load %arg4[%c4, %c0_23, %c0_24] : memref<9x32x64xbf16, #tpu.memory_space<vmem>>, vector<1x32x64xbf16>
    %35 = vector.shape_cast %34 : vector<1x32x64xbf16> to vector<32x64xbf16>
    %cst_25 = arith.constant dense<0.000000e+00> : vector<32x64xf32>
    %36 = tpu.matmul %33, %35, %cst_25 {dimension_numbers = #tpu.dot_dimension_numbers<[1], [0], [0], [1], [0, 0, 1, 1], [], []>} : vector<32x32xbf16>, vector<32x64xbf16>, vector<32x64xf32> -> vector<32x64xf32>
    %37 = arith.addf %32, %36 : vector<32x64xf32>
    %38 = vector.extract_strided_slice %11 {offsets = [160, 0], sizes = [32, 32], strides = [1, 1]} : vector<288x32xbf16> to vector<32x32xbf16>
    %c5 = arith.constant 5 : index
    %c0_26 = arith.constant 0 : index
    %c0_27 = arith.constant 0 : index
    %39 = vector.load %arg4[%c5, %c0_26, %c0_27] : memref<9x32x64xbf16, #tpu.memory_space<vmem>>, vector<1x32x64xbf16>
    %40 = vector.shape_cast %39 : vector<1x32x64xbf16> to vector<32x64xbf16>
    %cst_28 = arith.constant dense<0.000000e+00> : vector<32x64xf32>
    %41 = tpu.matmul %38, %40, %cst_28 {dimension_numbers = #tpu.dot_dimension_numbers<[1], [0], [0], [1], [0, 0, 1, 1], [], []>} : vector<32x32xbf16>, vector<32x64xbf16>, vector<32x64xf32> -> vector<32x64xf32>
    %42 = arith.addf %37, %41 : vector<32x64xf32>
    %43 = vector.extract_strided_slice %11 {offsets = [192, 0], sizes = [32, 32], strides = [1, 1]} : vector<288x32xbf16> to vector<32x32xbf16>
    %c6 = arith.constant 6 : index
    %c0_29 = arith.constant 0 : index
    %c0_30 = arith.constant 0 : index
    %44 = vector.load %arg4[%c6, %c0_29, %c0_30] : memref<9x32x64xbf16, #tpu.memory_space<vmem>>, vector<1x32x64xbf16>
    %45 = vector.shape_cast %44 : vector<1x32x64xbf16> to vector<32x64xbf16>
    %cst_31 = arith.constant dense<0.000000e+00> : vector<32x64xf32>
    %46 = tpu.matmul %43, %45, %cst_31 {dimension_numbers = #tpu.dot_dimension_numbers<[1], [0], [0], [1], [0, 0, 1, 1], [], []>} : vector<32x32xbf16>, vector<32x64xbf16>, vector<32x64xf32> -> vector<32x64xf32>
    %47 = arith.addf %42, %46 : vector<32x64xf32>
    %48 = vector.extract_strided_slice %11 {offsets = [224, 0], sizes = [32, 32], strides = [1, 1]} : vector<288x32xbf16> to vector<32x32xbf16>
    %c7 = arith.constant 7 : index
    %c0_32 = arith.constant 0 : index
    %c0_33 = arith.constant 0 : index
    %49 = vector.load %arg4[%c7, %c0_32, %c0_33] : memref<9x32x64xbf16, #tpu.memory_space<vmem>>, vector<1x32x64xbf16>
    %50 = vector.shape_cast %49 : vector<1x32x64xbf16> to vector<32x64xbf16>
    %cst_34 = arith.constant dense<0.000000e+00> : vector<32x64xf32>
    %51 = tpu.matmul %48, %50, %cst_34 {dimension_numbers = #tpu.dot_dimension_numbers<[1], [0], [0], [1], [0, 0, 1, 1], [], []>} : vector<32x32xbf16>, vector<32x64xbf16>, vector<32x64xf32> -> vector<32x64xf32>
    %52 = arith.addf %47, %51 : vector<32x64xf32>
    %53 = vector.extract_strided_slice %11 {offsets = [256, 0], sizes = [32, 32], strides = [1, 1]} : vector<288x32xbf16> to vector<32x32xbf16>
    %c8 = arith.constant 8 : index
    %c0_35 = arith.constant 0 : index
    %c0_36 = arith.constant 0 : index
    %54 = vector.load %arg4[%c8, %c0_35, %c0_36] : memref<9x32x64xbf16, #tpu.memory_space<vmem>>, vector<1x32x64xbf16>
    %55 = vector.shape_cast %54 : vector<1x32x64xbf16> to vector<32x64xbf16>
    %cst_37 = arith.constant dense<0.000000e+00> : vector<32x64xf32>
    %56 = tpu.matmul %53, %55, %cst_37 {dimension_numbers = #tpu.dot_dimension_numbers<[1], [0], [0], [1], [0, 0, 1, 1], [], []>} : vector<32x32xbf16>, vector<32x64xbf16>, vector<32x64xf32> -> vector<32x64xf32>
    %57 = arith.addf %52, %56 : vector<32x64xf32>
    %c0_38 = arith.constant 0 : index
    %c0_39 = arith.constant 0 : index
    %58 = vector.load %arg5[%c0_38, %c0_39] : memref<1x64xf32, #tpu.memory_space<vmem>>, vector<1x64xf32>
    %59 = vector.broadcast %58 : vector<1x64xf32> to vector<32x64xf32>
    %60 = arith.addf %57, %59 : vector<32x64xf32>
    %cst_40 = arith.constant 0.000000e+00 : f32
    %61 = vector.broadcast %cst_40 : f32 to vector<32x64xf32>
    %62 = arith.maximumf %60, %61 : vector<32x64xf32>
    %63 = arith.truncf %62 : vector<32x64xf32> to vector<32x64xbf16>
    %c0_41 = arith.constant 0 : index
    %c0_42 = arith.constant 0 : index
    %64 = vector.load %arg6[%c0_41, %c0_42] : memref<144x32xbf16, #tpu.memory_space<vmem>>, vector<144x32xbf16>
    %cst_43 = arith.constant dense<0.000000e+00> : vector<144x64xf32>
    %65 = tpu.matmul %64, %63, %cst_43 {dimension_numbers = #tpu.dot_dimension_numbers<[1], [0], [0], [1], [0, 0, 1, 1], [], []>} : vector<144x32xbf16>, vector<32x64xbf16>, vector<144x64xf32> -> vector<144x64xf32>
    %66 = arith.truncf %65 : vector<144x64xf32> to vector<144x64xbf16>
    %cst_44 = arith.constant 0.000000e+00 : f32
    %67 = vector.broadcast %cst_44 : f32 to vector<16x128xf32>
    %68 = vector.extract_strided_slice %66 {offsets = [0, 0], sizes = [16, 64], strides = [1, 1]} : vector<144x64xbf16> to vector<16x64xbf16>
    %c0_45 = arith.constant 0 : index
    %c0_46 = arith.constant 0 : index
    %c0_47 = arith.constant 0 : index
    %69 = vector.load %arg7[%c0_45, %c0_46, %c0_47] : memref<9x64x128xbf16, #tpu.memory_space<vmem>>, vector<1x64x128xbf16>
    %70 = vector.shape_cast %69 : vector<1x64x128xbf16> to vector<64x128xbf16>
    %cst_48 = arith.constant dense<0.000000e+00> : vector<16x128xf32>
    %71 = tpu.matmul %68, %70, %cst_48 {dimension_numbers = #tpu.dot_dimension_numbers<[1], [0], [0], [1], [0, 0, 1, 1], [], []>} : vector<16x64xbf16>, vector<64x128xbf16>, vector<16x128xf32> -> vector<16x128xf32>
    %72 = arith.addf %67, %71 : vector<16x128xf32>
    %73 = vector.extract_strided_slice %66 {offsets = [16, 0], sizes = [16, 64], strides = [1, 1]} : vector<144x64xbf16> to vector<16x64xbf16>
    %c1_49 = arith.constant 1 : index
    %c0_50 = arith.constant 0 : index
    %c0_51 = arith.constant 0 : index
    %74 = vector.load %arg7[%c1_49, %c0_50, %c0_51] : memref<9x64x128xbf16, #tpu.memory_space<vmem>>, vector<1x64x128xbf16>
    %75 = vector.shape_cast %74 : vector<1x64x128xbf16> to vector<64x128xbf16>
    %cst_52 = arith.constant dense<0.000000e+00> : vector<16x128xf32>
    %76 = tpu.matmul %73, %75, %cst_52 {dimension_numbers = #tpu.dot_dimension_numbers<[1], [0], [0], [1], [0, 0, 1, 1], [], []>} : vector<16x64xbf16>, vector<64x128xbf16>, vector<16x128xf32> -> vector<16x128xf32>
    %77 = arith.addf %72, %76 : vector<16x128xf32>
    %78 = vector.extract_strided_slice %66 {offsets = [32, 0], sizes = [16, 64], strides = [1, 1]} : vector<144x64xbf16> to vector<16x64xbf16>
    %c2_53 = arith.constant 2 : index
    %c0_54 = arith.constant 0 : index
    %c0_55 = arith.constant 0 : index
    %79 = vector.load %arg7[%c2_53, %c0_54, %c0_55] : memref<9x64x128xbf16, #tpu.memory_space<vmem>>, vector<1x64x128xbf16>
    %80 = vector.shape_cast %79 : vector<1x64x128xbf16> to vector<64x128xbf16>
    %cst_56 = arith.constant dense<0.000000e+00> : vector<16x128xf32>
    %81 = tpu.matmul %78, %80, %cst_56 {dimension_numbers = #tpu.dot_dimension_numbers<[1], [0], [0], [1], [0, 0, 1, 1], [], []>} : vector<16x64xbf16>, vector<64x128xbf16>, vector<16x128xf32> -> vector<16x128xf32>
    %82 = arith.addf %77, %81 : vector<16x128xf32>
    %83 = vector.extract_strided_slice %66 {offsets = [48, 0], sizes = [16, 64], strides = [1, 1]} : vector<144x64xbf16> to vector<16x64xbf16>
    %c3_57 = arith.constant 3 : index
    %c0_58 = arith.constant 0 : index
    %c0_59 = arith.constant 0 : index
    %84 = vector.load %arg7[%c3_57, %c0_58, %c0_59] : memref<9x64x128xbf16, #tpu.memory_space<vmem>>, vector<1x64x128xbf16>
    %85 = vector.shape_cast %84 : vector<1x64x128xbf16> to vector<64x128xbf16>
    %cst_60 = arith.constant dense<0.000000e+00> : vector<16x128xf32>
    %86 = tpu.matmul %83, %85, %cst_60 {dimension_numbers = #tpu.dot_dimension_numbers<[1], [0], [0], [1], [0, 0, 1, 1], [], []>} : vector<16x64xbf16>, vector<64x128xbf16>, vector<16x128xf32> -> vector<16x128xf32>
    %87 = arith.addf %82, %86 : vector<16x128xf32>
    %88 = vector.extract_strided_slice %66 {offsets = [64, 0], sizes = [16, 64], strides = [1, 1]} : vector<144x64xbf16> to vector<16x64xbf16>
    %c4_61 = arith.constant 4 : index
    %c0_62 = arith.constant 0 : index
    %c0_63 = arith.constant 0 : index
    %89 = vector.load %arg7[%c4_61, %c0_62, %c0_63] : memref<9x64x128xbf16, #tpu.memory_space<vmem>>, vector<1x64x128xbf16>
    %90 = vector.shape_cast %89 : vector<1x64x128xbf16> to vector<64x128xbf16>
    %cst_64 = arith.constant dense<0.000000e+00> : vector<16x128xf32>
    %91 = tpu.matmul %88, %90, %cst_64 {dimension_numbers = #tpu.dot_dimension_numbers<[1], [0], [0], [1], [0, 0, 1, 1], [], []>} : vector<16x64xbf16>, vector<64x128xbf16>, vector<16x128xf32> -> vector<16x128xf32>
    %92 = arith.addf %87, %91 : vector<16x128xf32>
    %93 = vector.extract_strided_slice %66 {offsets = [80, 0], sizes = [16, 64], strides = [1, 1]} : vector<144x64xbf16> to vector<16x64xbf16>
    %c5_65 = arith.constant 5 : index
    %c0_66 = arith.constant 0 : index
    %c0_67 = arith.constant 0 : index
    %94 = vector.load %arg7[%c5_65, %c0_66, %c0_67] : memref<9x64x128xbf16, #tpu.memory_space<vmem>>, vector<1x64x128xbf16>
    %95 = vector.shape_cast %94 : vector<1x64x128xbf16> to vector<64x128xbf16>
    %cst_68 = arith.constant dense<0.000000e+00> : vector<16x128xf32>
    %96 = tpu.matmul %93, %95, %cst_68 {dimension_numbers = #tpu.dot_dimension_numbers<[1], [0], [0], [1], [0, 0, 1, 1], [], []>} : vector<16x64xbf16>, vector<64x128xbf16>, vector<16x128xf32> -> vector<16x128xf32>
    %97 = arith.addf %92, %96 : vector<16x128xf32>
    %98 = vector.extract_strided_slice %66 {offsets = [96, 0], sizes = [16, 64], strides = [1, 1]} : vector<144x64xbf16> to vector<16x64xbf16>
    %c6_69 = arith.constant 6 : index
    %c0_70 = arith.constant 0 : index
    %c0_71 = arith.constant 0 : index
    %99 = vector.load %arg7[%c6_69, %c0_70, %c0_71] : memref<9x64x128xbf16, #tpu.memory_space<vmem>>, vector<1x64x128xbf16>
    %100 = vector.shape_cast %99 : vector<1x64x128xbf16> to vector<64x128xbf16>
    %cst_72 = arith.constant dense<0.000000e+00> : vector<16x128xf32>
    %101 = tpu.matmul %98, %100, %cst_72 {dimension_numbers = #tpu.dot_dimension_numbers<[1], [0], [0], [1], [0, 0, 1, 1], [], []>} : vector<16x64xbf16>, vector<64x128xbf16>, vector<16x128xf32> -> vector<16x128xf32>
    %102 = arith.addf %97, %101 : vector<16x128xf32>
    %103 = vector.extract_strided_slice %66 {offsets = [112, 0], sizes = [16, 64], strides = [1, 1]} : vector<144x64xbf16> to vector<16x64xbf16>
    %c7_73 = arith.constant 7 : index
    %c0_74 = arith.constant 0 : index
    %c0_75 = arith.constant 0 : index
    %104 = vector.load %arg7[%c7_73, %c0_74, %c0_75] : memref<9x64x128xbf16, #tpu.memory_space<vmem>>, vector<1x64x128xbf16>
    %105 = vector.shape_cast %104 : vector<1x64x128xbf16> to vector<64x128xbf16>
    %cst_76 = arith.constant dense<0.000000e+00> : vector<16x128xf32>
    %106 = tpu.matmul %103, %105, %cst_76 {dimension_numbers = #tpu.dot_dimension_numbers<[1], [0], [0], [1], [0, 0, 1, 1], [], []>} : vector<16x64xbf16>, vector<64x128xbf16>, vector<16x128xf32> -> vector<16x128xf32>
    %107 = arith.addf %102, %106 : vector<16x128xf32>
    %108 = vector.extract_strided_slice %66 {offsets = [128, 0], sizes = [16, 64], strides = [1, 1]} : vector<144x64xbf16> to vector<16x64xbf16>
    %c8_77 = arith.constant 8 : index
    %c0_78 = arith.constant 0 : index
    %c0_79 = arith.constant 0 : index
    %109 = vector.load %arg7[%c8_77, %c0_78, %c0_79] : memref<9x64x128xbf16, #tpu.memory_space<vmem>>, vector<1x64x128xbf16>
    %110 = vector.shape_cast %109 : vector<1x64x128xbf16> to vector<64x128xbf16>
    %cst_80 = arith.constant dense<0.000000e+00> : vector<16x128xf32>
    %111 = tpu.matmul %108, %110, %cst_80 {dimension_numbers = #tpu.dot_dimension_numbers<[1], [0], [0], [1], [0, 0, 1, 1], [], []>} : vector<16x64xbf16>, vector<64x128xbf16>, vector<16x128xf32> -> vector<16x128xf32>
    %112 = arith.addf %107, %111 : vector<16x128xf32>
    %c0_81 = arith.constant 0 : index
    %c0_82 = arith.constant 0 : index
    %113 = vector.load %arg8[%c0_81, %c0_82] : memref<1x128xf32, #tpu.memory_space<vmem>>, vector<1x128xf32>
    %114 = vector.broadcast %113 : vector<1x128xf32> to vector<16x128xf32>
    %115 = arith.addf %112, %114 : vector<16x128xf32>
    %cst_83 = arith.constant 0.000000e+00 : f32
    %116 = vector.broadcast %cst_83 : f32 to vector<16x128xf32>
    %117 = arith.maximumf %115, %116 : vector<16x128xf32>
    %c0_84 = arith.constant 0 : index
    %c0_85 = arith.constant 0 : index
    %118 = vector.load %arg9[%c0_84, %c0_85] : memref<16x128xf32, #tpu.memory_space<vmem>>, vector<16x128xf32>
    tpu.vector_store %arg9[%c0_84, %c0_85], %117 {strides = array<i32>} : memref<16x128xf32, #tpu.memory_space<vmem>>, vector<16x128xf32>,
    return
  }
}

</mosaic_0001>

<llo_original>
// kernel: tpu_custom_call.1
$region0: #{tpu_custom_call.1}
  #allocation0 [shape = 'u32[]', space=smem, size = 0x4, offset = 0x4, fixed_abs, tag = 'smem constant byte address 0x4 - core index']
  #allocation1 [shape = 'u32[144,128]{1,0:T(1,128)}', space=vmem, size = 0x12000, scoped, tag = 'internal scratch']
  %s0 = inlined_call_operand.hbm [shape: bf16[128,128], index: 0, kind: input, shape index: {}]
  %s1 = inlined_call_operand.vmem [shape: bf16[128,32], index: 1, kind: input, shape index: {}]
  %s2 = inlined_call_operand.vmem [shape: f32[1,32], index: 2, kind: input, shape index: {}]
  %s3 = inlined_call_operand.vmem [shape: bf16[288,128], index: 3, kind: input, shape index: {}]
  %s4 = inlined_call_operand.hbm [shape: bf16[9,32,64], index: 4, kind: input, shape index: {}]
  %s5 = inlined_call_operand.vmem [shape: f32[1,64], index: 5, kind: input, shape index: {}]
  %s6 = inlined_call_operand.vmem [shape: bf16[144,32], index: 6, kind: input, shape index: {}]
  %s7 = inlined_call_operand.hbm [shape: bf16[9,64,128], index: 7, kind: input, shape index: {}]
  %s8 = inlined_call_operand.vmem [shape: f32[1,128], index: 8, kind: input, shape index: {}]
  %s9 = inlined_call_operand.hbm [shape: f32[16,128], index: 9, kind: output, shape index: {}]
  %s10 = sld [smem:[#allocation0]]
  $region58: #{tpu_custom_call.1} parent=0
    _
  %s12 = ssub.s32 1, %s10
  %s13 = scalar_select 0, %s12, %s10
  $region1: #{tpu_custom_call.1} parent=0
    #allocation2 [shape = 'u8[32768]{0}', space=vmem, size = 0x8000, scoped, tag = 'input window, operand 0, single buffered']
    #allocation3 [shape = 's32[1]{0}', space=sflag, size = 0x4, scoped, tag = 'scoped memory for tpu_custom_call.1']
    #allocation4 [shape = 's32[1]{0}', space=sflag, size = 0x4, scoped, tag = 'scoped memory for tpu_custom_call.1']
    #allocation5 [shape = 'u8[73728]{0}', space=vmem, size = 0x12000, scoped, tag = 'input window, operand 4, single buffered']
    #allocation6 [shape = 's32[1]{0}', space=sflag, size = 0x4, scoped, tag = 'scoped memory for tpu_custom_call.1']
    #allocation7 [shape = 'u8[147456]{0}', space=vmem, size = 0x24000, scoped, tag = 'input window, operand 7, single buffered']
    #allocation8 [shape = 'u8[8192]{0}', space=vmem, size = 0x2000, scoped, tag = 'output window, operand 0, single buffered']
    %14 = vsyncpa [#allocation3], 0
    %15 = vsyncpa [#allocation6], 0
    %16 = vsyncpa [#allocation4], 0
    // Predicated region
    $region2: #{tpu_custom_call.1} parent=1 // pred_check
      _
    $region3: #{tpu_custom_call.1} parent=1 // pred_check_branch
      %18 = sbr.rel (0) target = $region5
    $region4: #{tpu_custom_call.1} parent=1 // pred_region
      %s20 = ssub.s32 1024, 1024
      %21 = vsyncadd [#allocation3], %s20
      %s22 = sshll.u32 [#allocation2], 4
      %s23 = int_to_ptr.vmem [resolvable:$true] %s22
      %28 = dma.hbm_to_vmem [thread:$0]  %s0, 1024, %s23, [#allocation3], 64, 64, 4
    $region5: #{tpu_custom_call.1} parent=1 // pred_fallthru
      _
    // Predicated region
    $region6: #{tpu_custom_call.1} parent=1 // pred_check
      _
    $region7: #{tpu_custom_call.1} parent=1 // pred_check_branch
      %30 = sbr.rel (0) target = $region9
    $region8: #{tpu_custom_call.1} parent=1 // pred_region
      _
    $region9: #{tpu_custom_call.1} parent=1 // pred_fallthru
      _
    // Predicated region
    $region10: #{tpu_custom_call.1} parent=1 // pred_check
      _
    $region11: #{tpu_custom_call.1} parent=1 // pred_check_branch
      %32 = sbr.rel (0) target = $region13
    $region12: #{tpu_custom_call.1} parent=1 // pred_region
      _
    $region13: #{tpu_custom_call.1} parent=1 // pred_fallthru
      _
    // Predicated region
    $region14: #{tpu_custom_call.1} parent=1 // pred_check
      _
    $region15: #{tpu_custom_call.1} parent=1 // pred_check_branch
      %34 = sbr.rel (0) target = $region17
    $region16: #{tpu_custom_call.1} parent=1 // pred_region
      _
    $region17: #{tpu_custom_call.1} parent=1 // pred_fallthru
      _
    // Predicated region
    $region18: #{tpu_custom_call.1} parent=1 // pred_check
      _
    $region19: #{tpu_custom_call.1} parent=1 // pred_check_branch
      %36 = sbr.rel (0) target = $region21
    $region20: #{tpu_custom_call.1} parent=1 // pred_region
      %s38 = ssub.s32 2304, 2304
      %39 = vsyncadd [#allocation6], %s38
      %s40 = sshll.u32 [#allocation5], 4
      %s41 = int_to_ptr.vmem [resolvable:$true] %s40
      %46 = dma.hbm_to_vmem [thread:$0]  %s4, 2304, %s41, [#allocation6], 64, 64, 4
    $region21: #{tpu_custom_call.1} parent=1 // pred_fallthru
      _
    // Predicated region
    $region22: #{tpu_custom_call.1} parent=1 // pred_check
      _
    $region23: #{tpu_custom_call.1} parent=1 // pred_check_branch
      %48 = sbr.rel (0) target = $region25
    $region24: #{tpu_custom_call.1} parent=1 // pred_region
      _
    $region25: #{tpu_custom_call.1} parent=1 // pred_fallthru
      _
    // Predicated region
    $region26: #{tpu_custom_call.1} parent=1 // pred_check
      _
    $region27: #{tpu_custom_call.1} parent=1 // pred_check_branch
      %50 = sbr.rel (0) target = $region29
    $region28: #{tpu_custom_call.1} parent=1 // pred_region
      _
    $region29: #{tpu_custom_call.1} parent=1 // pred_fallthru
      _
    // Predicated region
    $region30: #{tpu_custom_call.1} parent=1 // pred_check
      _
    $region31: #{tpu_custom_call.1} parent=1 // pred_check_branch
      %52 = sbr.rel (0) target = $region33
    $region32: #{tpu_custom_call.1} parent=1 // pred_region
      %s54 = ssub.s32 4608, 4608
      %55 = vsyncadd [#allocation6], %s54
      %s56 = sshll.u32 [#allocation7], 4
      %s57 = int_to_ptr.vmem [resolvable:$true] %s56
      %62 = dma.hbm_to_vmem [thread:$0]  %s7, 4608, %s57, [#allocation6], 64, 64, 4
    $region33: #{tpu_custom_call.1} parent=1 // pred_fallthru
      _
    // Predicated region
    $region34: #{tpu_custom_call.1} parent=1 // pred_check
      _
    $region35: #{tpu_custom_call.1} parent=1 // pred_check_branch
      %64 = sbr.rel (0) target = $region37
    $region36: #{tpu_custom_call.1} parent=1 // pred_region
      _
    $region37: #{tpu_custom_call.1} parent=1 // pred_fallthru
      _
    // Predicated region
    $region38: #{tpu_custom_call.1} parent=1 // pred_check
      _
    $region39: #{tpu_custom_call.1} parent=1 // pred_check_branch
      %66 = sbr.rel (0) target = $region41
    $region40: #{tpu_custom_call.1} parent=1 // pred_region
      %67 = dma.done [#allocation3], 1024
    $region41: #{tpu_custom_call.1} parent=1 // pred_fallthru
      _
    // Predicated region
    $region42: #{tpu_custom_call.1} parent=1 // pred_check
      _
    $region43: #{tpu_custom_call.1} parent=1 // pred_check_branch
      %69 = sbr.rel (0) target = $region45
    $region44: #{tpu_custom_call.1} parent=1 // pred_region
      %70 = dma.done [#allocation6], 2304
    $region45: #{tpu_custom_call.1} parent=1 // pred_fallthru
      _
    // Predicated region
    $region46: #{tpu_custom_call.1} parent=1 // pred_check
      _
    $region47: #{tpu_custom_call.1} parent=1 // pred_check_branch
      %72 = sbr.rel (0) target = $region49
    $region48: #{tpu_custom_call.1} parent=1 // pred_region
      %73 = dma.done [#allocation6], 4608
    $region49: #{tpu_custom_call.1} parent=1 // pred_fallthru
      _
    %v75 = vld [vmem:[#allocation2] sm:$0xf]
    %v76 = vld [vmem:[#allocation2 + $0x4] sm:$0xf]
    %v77 = vld [vmem:[#allocation2 + $0x8] sm:$0xf]
    %v78 = vld [vmem:[#allocation2 + $0xc] sm:$0xf]
    %v79 = vld [vmem:[#allocation2 + $0x10] sm:$0xf]
    %v80 = vld [vmem:[#allocation2 + $0x14] sm:$0xf]
    %v81 = vld [vmem:[#allocation2 + $0x18] sm:$0xf]
    %v82 = vld [vmem:[#allocation2 + $0x1c] sm:$0xf]
    %v83 = vld [vmem:[#allocation2 + $0x20] sm:$0xf]
    %v84 = vld [vmem:[#allocation2 + $0x24] sm:$0xf]
    %v85 = vld [vmem:[#allocation2 + $0x28] sm:$0xf]
    %v86 = vld [vmem:[#allocation2 + $0x2c] sm:$0xf]
    %v87 = vld [vmem:[#allocation2 + $0x30] sm:$0xf]
    %v88 = vld [vmem:[#allocation2 + $0x34] sm:$0xf]
    %v89 = vld [vmem:[#allocation2 + $0x38] sm:$0xf]
    %v90 = vld [vmem:[#allocation2 + $0x3c] sm:$0xf]
    %v91 = vld [vmem:[%s1] sm:$0xf]
    %v92 = vld [vmem:[%s1 + $0x4] sm:$0xf]
    %v93 = vld [vmem:[%s1 + $0x8] sm:$0xf]
    %v94 = vld [vmem:[%s1 + $0xc] sm:$0xf]
    %v95 = vld [vmem:[%s1 + $0x10] sm:$0xf]
    %v96 = vld [vmem:[%s1 + $0x14] sm:$0xf]
    %v97 = vld [vmem:[%s1 + $0x18] sm:$0xf]
    %v98 = vld [vmem:[%s1 + $0x1c] sm:$0xf]
    %v99 = vld [vmem:[%s1 + $0x20] sm:$0xf]
    %v100 = vld [vmem:[%s1 + $0x24] sm:$0xf]
    %v101 = vld [vmem:[%s1 + $0x28] sm:$0xf]
    %v102 = vld [vmem:[%s1 + $0x2c] sm:$0xf]
    %v103 = vld [vmem:[%s1 + $0x30] sm:$0xf]
    %v104 = vld [vmem:[%s1 + $0x34] sm:$0xf]
    %v105 = vld [vmem:[%s1 + $0x38] sm:$0xf]
    %v106 = vld [vmem:[%s1 + $0x3c] sm:$0xf]
    %v107 = vld [vmem:[%s2] sm:$0x1]
    %v109 = vlaneseq
    %v110 = vshrl.u32 %v109, 7
    %v111 = vsub.s32 0, %v110
    %v112 = vrot.slane %v107, %v111
    %v130 = vunpack.c.l.b16 %v75
    %v131 = vunpack.c.l.b16 %v76
    %v132 = vunpack.c.l.b16 %v77
    %v133 = vunpack.c.l.b16 %v78
    %v134 = vunpack.c.l.b16 %v79
    %v135 = vunpack.c.l.b16 %v80
    %v136 = vunpack.c.l.b16 %v81
    %v137 = vunpack.c.l.b16 %v82
    %v138 = vunpack.c.l.b16 %v83
    %v139 = vunpack.c.l.b16 %v84
    %v140 = vunpack.c.l.b16 %v85
    %v141 = vunpack.c.l.b16 %v86
    %v142 = vunpack.c.l.b16 %v87
    %v143 = vunpack.c.l.b16 %v88
    %v144 = vunpack.c.l.b16 %v89
    %v145 = vunpack.c.l.b16 %v90
    %v146 = vpack.c.b16 %v131, %v130
    %v147 = vpack.c.b16 %v133, %v132
    %v148 = vpack.c.b16 %v135, %v134
    %v149 = vpack.c.b16 %v137, %v136
    %v150 = vpack.c.b16 %v139, %v138
    %v151 = vpack.c.b16 %v141, %v140
    %v152 = vpack.c.b16 %v143, %v142
    %v153 = vpack.c.b16 %v145, %v144
    %v178 = vunpack.c.l.b16 %v91
    %v179 = vunpack.c.l.b16 %v92
    %v180 = vunpack.c.l.b16 %v93
    %v181 = vunpack.c.l.b16 %v94
    %v182 = vunpack.c.l.b16 %v95
    %v183 = vunpack.c.l.b16 %v96
    %v184 = vunpack.c.l.b16 %v97
    %v185 = vunpack.c.l.b16 %v98
    %v186 = vunpack.c.l.b16 %v99
    %v187 = vunpack.c.l.b16 %v100
    %v188 = vunpack.c.l.b16 %v101
    %v189 = vunpack.c.l.b16 %v102
    %v190 = vunpack.c.l.b16 %v103
    %v191 = vunpack.c.l.b16 %v104
    %v192 = vunpack.c.l.b16 %v105
    %v193 = vunpack.c.l.b16 %v106
    %v194 = vpack.c.b16 %v179, %v178
    %v195 = vpack.c.b16 %v181, %v180
    %v196 = vpack.c.b16 %v183, %v182
    %v197 = vpack.c.b16 %v185, %v184
    %v198 = vpack.c.b16 %v187, %v186
    %v199 = vpack.c.b16 %v189, %v188
    %v200 = vpack.c.b16 %v191, %v190
    %v201 = vpack.c.b16 %v193, %v192
    %210 = vmatprep.subr.bf16.mxu0 0
    %211 = vmatpush1.bf16.msra.mxu0 %v194
    %212 = vmatprep.subr.bf16.mxu0 0
    %213 = vmatpush1.bf16.msra.mxu0 %v195
    %214 = vmatprep.subr.bf16.mxu0 0
    %215 = vmatpush1.bf16.msra.mxu0 %v196
    %216 = vmatprep.subr.bf16.mxu0 0
    %217 = vmatpush1.bf16.msra.mxu0 %v197
    %218 = vmatprep.subr.bf16.mxu0 0
    %219 = vmatpush1.bf16.msra.mxu0 %v198
    %220 = vmatprep.subr.bf16.mxu0 0
    %221 = vmatpush1.bf16.msra.mxu0 %v199
    %222 = vmatprep.subr.bf16.mxu0 0
    %223 = vmatpush1.bf16.msra.mxu0 %v200
    %224 = vmatprep.subr.bf16.mxu0 0
    %225 = vmatpush1.bf16.msra.mxu0 %v201
    %226 = vmatprep.subr.bf16.mxu0 0
    %227 = vmatpush1.bf16.msra.mxu0 0
    %228 = vmatprep.subr.bf16.mxu0 0
    %229 = vmatpush1.bf16.msra.mxu0 0
    %230 = vmatprep.subr.bf16.mxu0 0
    %231 = vmatpush1.bf16.msra.mxu0 0
    %232 = vmatprep.subr.bf16.mxu0 0
    %233 = vmatpush1.bf16.msra.mxu0 0
    %234 = vmatprep.subr.bf16.mxu0 0
    %235 = vmatpush1.bf16.msra.mxu0 0
    %236 = vmatprep.subr.bf16.mxu0 0
    %237 = vmatpush1.bf16.msra.mxu0 0
    %238 = vmatprep.subr.bf16.mxu0 0
    %239 = vmatpush1.bf16.msra.mxu0 0
    %240 = vmatprep.subr.bf16.mxu0 0
    %241 = vmatpush1.bf16.msra.mxu0 0
    %242 = vmatprep.mubr.bf16.mxu0 0
    %243 = vmatmul.mubr.bf16.gmra.mrb[0].mxu0 %v146
    %v244 = vpop.f32.mrb[0].mxu0
    %v245 = vadd.f32 %v112, %v244
    %v246 = vpop.f32.mrb[0].mxu0
    %v247 = vpop.f32.mrb[0].mxu0
    %v248 = vadd.f32 %v112, %v247
    %v249 = vpop.f32.mrb[0].mxu0
    %250 = vmatprep.mubr.bf16.mxu0 0
    %251 = vmatmul.mubr.bf16.gmra.mrb[0].mxu0 %v147
    %v252 = vpop.f32.mrb[0].mxu0
    %v253 = vadd.f32 %v112, %v252
    %v254 = vpop.f32.mrb[0].mxu0
    %v255 = vpop.f32.mrb[0].mxu0
    %v256 = vadd.f32 %v112, %v255
    %v257 = vpop.f32.mrb[0].mxu0
    %258 = vmatprep.mubr.bf16.mxu0 0
    %259 = vmatmul.mubr.bf16.gmra.mrb[0].mxu0 %v148
    %v260 = vpop.f32.mrb[0].mxu0
    %v261 = vadd.f32 %v112, %v260
    %v262 = vpop.f32.mrb[0].mxu0
    %v263 = vpop.f32.mrb[0].mxu0
    %v264 = vadd.f32 %v112, %v263
    %v265 = vpop.f32.mrb[0].mxu0
    %266 = vmatprep.mubr.bf16.mxu0 0
    %267 = vmatmul.mubr.bf16.gmra.mrb[0].mxu0 %v149
    %v268 = vpop.f32.mrb[0].mxu0
    %v269 = vadd.f32 %v112, %v268
    %v270 = vpop.f32.mrb[0].mxu0
    %v271 = vpop.f32.mrb[0].mxu0
    %v272 = vadd.f32 %v112, %v271
    %v273 = vpop.f32.mrb[0].mxu0
    %274 = vmatprep.mubr.bf16.mxu0 0
    %275 = vmatmul.mubr.bf16.gmra.mrb[0].mxu0 %v150
    %v276 = vpop.f32.mrb[0].mxu0
    %v277 = vadd.f32 %v112, %v276
    %v278 = vpop.f32.mrb[0].mxu0
    %v279 = vpop.f32.mrb[0].mxu0
    %v280 = vadd.f32 %v112, %v279
    %v281 = vpop.f32.mrb[0].mxu0
    %282 = vmatprep.mubr.bf16.mxu0 0
    %283 = vmatmul.mubr.bf16.gmra.mrb[0].mxu0 %v151
    %v284 = vpop.f32.mrb[0].mxu0
    %v285 = vadd.f32 %v112, %v284
    %v286 = vpop.f32.mrb[0].mxu0
    %v287 = vpop.f32.mrb[0].mxu0
    %v288 = vadd.f32 %v112, %v287
    %v289 = vpop.f32.mrb[0].mxu0
    %290 = vmatprep.mubr.bf16.mxu0 0
    %291 = vmatmul.mubr.bf16.gmra.mrb[0].mxu0 %v152
    %v292 = vpop.f32.mrb[0].mxu0
    %v293 = vadd.f32 %v112, %v292
    %v294 = vpop.f32.mrb[0].mxu0
    %v295 = vpop.f32.mrb[0].mxu0
    %v296 = vadd.f32 %v112, %v295
    %v297 = vpop.f32.mrb[0].mxu0
    %298 = vmatprep.mubr.bf16.mxu0 0
    %299 = vmatmul.mubr.bf16.gmra.mrb[0].mxu0 %v153
    %v300 = vpop.f32.mrb[0].mxu0
    %v301 = vadd.f32 %v112, %v300
    %v302 = vpop.f32.mrb[0].mxu0
    %v303 = vpop.f32.mrb[0].mxu0
    %v304 = vadd.f32 %v112, %v303
    %v305 = vpop.f32.mrb[0].mxu0
    %306 = vdwg.mxu0
    %v307 = vmax.f32 %v245, 0.0
    %v308 = vmax.f32 %v248, 0.0
    %v309 = vmax.f32 %v253, 0.0
    %v310 = vmax.f32 %v256, 0.0
    %v311 = vmax.f32 %v261, 0.0
    %v312 = vmax.f32 %v264, 0.0
    %v313 = vmax.f32 %v269, 0.0
    %v314 = vmax.f32 %v272, 0.0
    %v315 = vmax.f32 %v277, 0.0
    %v316 = vmax.f32 %v280, 0.0
    %v317 = vmax.f32 %v285, 0.0
    %v318 = vmax.f32 %v288, 0.0
    %v319 = vmax.f32 %v293, 0.0
    %v320 = vmax.f32 %v296, 0.0
    %v321 = vmax.f32 %v301, 0.0
    %v322 = vmax.f32 %v304, 0.0
    %v323 = vpack.c.bf16 %v308, %v307
    %v324 = vpack.c.bf16 %v310, %v309
    %v325 = vpack.c.bf16 %v312, %v311
    %v326 = vpack.c.bf16 %v314, %v313
    %v327 = vpack.c.bf16 %v316, %v315
    %v328 = vpack.c.bf16 %v318, %v317
    %v329 = vpack.c.bf16 %v320, %v319
    %v330 = vpack.c.bf16 %v322, %v321
    %v331 = vld [vmem:[%s3] sm:$0xf]
    %v332 = vld [vmem:[%s3 + $0x4] sm:$0xf]
    %v333 = vld [vmem:[%s3 + $0x8] sm:$0xf]
    %v334 = vld [vmem:[%s3 + $0xc] sm:$0xf]
    %v335 = vld [vmem:[%s3 + $0x10] sm:$0xf]
    %v336 = vld [vmem:[%s3 + $0x14] sm:$0xf]
    %v337 = vld [vmem:[%s3 + $0x18] sm:$0xf]
    %v338 = vld [vmem:[%s3 + $0x1c] sm:$0xf]
    %v339 = vld [vmem:[%s3 + $0x20] sm:$0xf]
    %v340 = vld [vmem:[%s3 + $0x24] sm:$0xf]
    %v341 = vld [vmem:[%s3 + $0x28] sm:$0xf]
    %v342 = vld [vmem:[%s3 + $0x2c] sm:$0xf]
    %v343 = vld [vmem:[%s3 + $0x30] sm:$0xf]
    %v344 = vld [vmem:[%s3 + $0x34] sm:$0xf]
    %v345 = vld [vmem:[%s3 + $0x38] sm:$0xf]
    %v346 = vld [vmem:[%s3 + $0x3c] sm:$0xf]
    %v347 = vld [vmem:[%s3 + $0x40] sm:$0xf]
    %v348 = vld [vmem:[%s3 + $0x44] sm:$0xf]
    %v349 = vld [vmem:[%s3 + $0x48] sm:$0xf]
    %v350 = vld [vmem:[%s3 + $0x4c] sm:$0xf]
    %v351 = vld [vmem:[%s3 + $0x50] sm:$0xf]
    %v352 = vld [vmem:[%s3 + $0x54] sm:$0xf]
    %v353 = vld [vmem:[%s3 + $0x58] sm:$0xf]
    %v354 = vld [vmem:[%s3 + $0x5c] sm:$0xf]
    %v355 = vld [vmem:[%s3 + $0x60] sm:$0xf]
    %v356 = vld [vmem:[%s3 + $0x64] sm:$0xf]
    %v357 = vld [vmem:[%s3 + $0x68] sm:$0xf]
    %v358 = vld [vmem:[%s3 + $0x6c] sm:$0xf]
    %v359 = vld [vmem:[%s3 + $0x70] sm:$0xf]
    %v360 = vld [vmem:[%s3 + $0x74] sm:$0xf]
    %v361 = vld [vmem:[%s3 + $0x78] sm:$0xf]
    %v362 = vld [vmem:[%s3 + $0x7c] sm:$0xf]
    %v363 = vld [vmem:[%s3 + $0x80] sm:$0xf]
    %v364 = vld [vmem:[%s3 + $0x84] sm:$0xf]
    %v365 = vld [vmem:[%s3 + $0x88] sm:$0xf]
    %v366 = vld [vmem:[%s3 + $0x8c] sm:$0xf]
    %v403 = vunpack.c.l.b16 %v331
    %v404 = vunpack.c.l.b16 %v332
    %v405 = vunpack.c.l.b16 %v333
    %v406 = vunpack.c.l.b16 %v334
    %v407 = vunpack.c.l.b16 %v335
    %v408 = vunpack.c.l.b16 %v336
    %v409 = vunpack.c.l.b16 %v337
    %v410 = vunpack.c.l.b16 %v338
    %v411 = vunpack.c.l.b16 %v339
    %v412 = vunpack.c.l.b16 %v340
    %v413 = vunpack.c.l.b16 %v341
    %v414 = vunpack.c.l.b16 %v342
    %v415 = vunpack.c.l.b16 %v343
    %v416 = vunpack.c.l.b16 %v344
    %v417 = vunpack.c.l.b16 %v345
    %v418 = vunpack.c.l.b16 %v346
    %v419 = vunpack.c.l.b16 %v347
    %v420 = vunpack.c.l.b16 %v348
    %v421 = vunpack.c.l.b16 %v349
    %v422 = vunpack.c.l.b16 %v350
    %v423 = vunpack.c.l.b16 %v351
    %v424 = vunpack.c.l.b16 %v352
    %v425 = vunpack.c.l.b16 %v353
    %v426 = vunpack.c.l.b16 %v354
    %v427 = vunpack.c.l.b16 %v355
    %v428 = vunpack.c.l.b16 %v356
    %v429 = vunpack.c.l.b16 %v357
    %v430 = vunpack.c.l.b16 %v358
    %v431 = vunpack.c.l.b16 %v359
    %v432 = vunpack.c.l.b16 %v360
    %v433 = vunpack.c.l.b16 %v361
    %v434 = vunpack.c.l.b16 %v362
    %v435 = vunpack.c.l.b16 %v363
    %v436 = vunpack.c.l.b16 %v364
    %v437 = vunpack.c.l.b16 %v365
    %v438 = vunpack.c.l.b16 %v366
    %v439 = vpack.c.b16 %v404, %v403
    %v440 = vpack.c.b16 %v406, %v405
    %v441 = vpack.c.b16 %v408, %v407
    %v442 = vpack.c.b16 %v410, %v409
    %v443 = vpack.c.b16 %v412, %v411
    %v444 = vpack.c.b16 %v414, %v413
    %v445 = vpack.c.b16 %v416, %v415
    %v446 = vpack.c.b16 %v418, %v417
    %v447 = vpack.c.b16 %v420, %v419
    %v448 = vpack.c.b16 %v422, %v421
    %v449 = vpack.c.b16 %v424, %v423
    %v450 = vpack.c.b16 %v426, %v425
    %v451 = vpack.c.b16 %v428, %v427
    %v452 = vpack.c.b16 %v430, %v429
    %v453 = vpack.c.b16 %v432, %v431
    %v454 = vpack.c.b16 %v434, %v433
    %v455 = vpack.c.b16 %v436, %v435
    %v456 = vpack.c.b16 %v438, %v437
    %475 = vmatprep.subr.bf16.mxu0 0
    %476 = vmatpush1.bf16.msra.mxu0 %v323
    %477 = vmatprep.subr.bf16.mxu0 0
    %478 = vmatpush1.bf16.msra.mxu0 %v324
    %479 = vmatprep.subr.bf16.mxu0 0
    %480 = vmatpush1.bf16.msra.mxu0 %v325
    %481 = vmatprep.subr.bf16.mxu0 0
    %482 = vmatpush1.bf16.msra.mxu0 %v326
    %483 = vmatprep.subr.bf16.mxu0 0
    %484 = vmatpush1.bf16.msra.mxu0 %v327
    %485 = vmatprep.subr.bf16.mxu0 0
    %486 = vmatpush1.bf16.msra.mxu0 %v328
    %487 = vmatprep.subr.bf16.mxu0 0
    %488 = vmatpush1.bf16.msra.mxu0 %v329
    %489 = vmatprep.subr.bf16.mxu0 0
    %490 = vmatpush1.bf16.msra.mxu0 %v330
    %491 = vmatprep.subr.bf16.mxu0 0
    %492 = vmatpush1.bf16.msra.mxu0 0
    %493 = vmatprep.subr.bf16.mxu0 0
    %494 = vmatpush1.bf16.msra.mxu0 0
    %495 = vmatprep.subr.bf16.mxu0 0
    %496 = vmatpush1.bf16.msra.mxu0 0
    %497 = vmatprep.subr.bf16.mxu0 0
    %498 = vmatpush1.bf16.msra.mxu0 0
    %499 = vmatprep.subr.bf16.mxu0 0
    %500 = vmatpush1.bf16.msra.mxu0 0
    %501 = vmatprep.subr.bf16.mxu0 0
    %502 = vmatpush1.bf16.msra.mxu0 0
    %503 = vmatprep.subr.bf16.mxu0 0
    %504 = vmatpush1.bf16.msra.mxu0 0
    %505 = vmatprep.subr.bf16.mxu0 0
    %506 = vmatpush1.bf16.msra.mxu0 0
    %507 = vmatprep.mubr.bf16.mxu0 0
    %508 = vmatmul.mubr.bf16.gmra.mrb[0].mxu0 %v439
    %v509 = vpop.f32.mrb[0].mxu0
    %v510 = vadd.f32 0.0, %v509
    %v511 = vpop.f32.mrb[0].mxu0
    %v512 = vpop.f32.mrb[0].mxu0
    %v513 = vadd.f32 0.0, %v512
    %v514 = vpop.f32.mrb[0].mxu0
    %515 = vmatprep.mubr.bf16.mxu0 0
    %516 = vmatmul.mubr.bf16.gmra.mrb[0].mxu0 %v440
    %v517 = vpop.f32.mrb[0].mxu0
    %v518 = vadd.f32 0.0, %v517
    %v519 = vpop.f32.mrb[0].mxu0
    %v520 = vpop.f32.mrb[0].mxu0
    %v521 = vadd.f32 0.0, %v520
    %v522 = vpop.f32.mrb[0].mxu0
    %523 = vmatprep.mubr.bf16.mxu0 0
    %524 = vmatmul.mubr.bf16.gmra.mrb[0].mxu0 %v441
    %v525 = vpop.f32.mrb[0].mxu0
    %v526 = vadd.f32 0.0, %v525
    %v527 = vpop.f32.mrb[0].mxu0
    %v528 = vpop.f32.mrb[0].mxu0
    %v529 = vadd.f32 0.0, %v528
    %v530 = vpop.f32.mrb[0].mxu0
    %531 = vmatprep.mubr.bf16.mxu0 0
    %532 = vmatmul.mubr.bf16.gmra.mrb[0].mxu0 %v442
    %v533 = vpop.f32.mrb[0].mxu0
    %v534 = vadd.f32 0.0, %v533
    %v535 = vpop.f32.mrb[0].mxu0
    %v536 = vpop.f32.mrb[0].mxu0
    %v537 = vadd.f32 0.0, %v536
    %v538 = vpop.f32.mrb[0].mxu0
    %539 = vmatprep.mubr.bf16.mxu0 0
    %540 = vmatmul.mubr.bf16.gmra.mrb[0].mxu0 %v443
    %v541 = vpop.f32.mrb[0].mxu0
    %v542 = vadd.f32 0.0, %v541
    %v543 = vpop.f32.mrb[0].mxu0
    %v544 = vpop.f32.mrb[0].mxu0
    %v545 = vadd.f32 0.0, %v544
    %v546 = vpop.f32.mrb[0].mxu0
    %547 = vmatprep.mubr.bf16.mxu0 0
    %548 = vmatmul.mubr.bf16.gmra.mrb[0].mxu0 %v444
    %v549 = vpop.f32.mrb[0].mxu0
    %v550 = vadd.f32 0.0, %v549
    %v551 = vpop.f32.mrb[0].mxu0
    %v552 = vpop.f32.mrb[0].mxu0
    %v553 = vadd.f32 0.0, %v552
    %v554 = vpop.f32.mrb[0].mxu0
    %555 = vmatprep.mubr.bf16.mxu0 0
    %556 = vmatmul.mubr.bf16.gmra.mrb[0].mxu0 %v445
    %v557 = vpop.f32.mrb[0].mxu0
    %v558 = vadd.f32 0.0, %v557
    %v559 = vpop.f32.mrb[0].mxu0
    %v560 = vpop.f32.mrb[0].mxu0
    %v561 = vadd.f32 0.0, %v560
    %v562 = vpop.f32.mrb[0].mxu0
    %563 = vmatprep.mubr.bf16.mxu0 0
    %564 = vmatmul.mubr.bf16.gmra.mrb[0].mxu0 %v446
    %v565 = vpop.f32.mrb[0].mxu0
    %v566 = vadd.f32 0.0, %v565
    %v567 = vpop.f32.mrb[0].mxu0
    %v568 = vpop.f32.mrb[0].mxu0
    %v569 = vadd.f32 0.0, %v568
    %v570 = vpop.f32.mrb[0].mxu0
    %571 = vmatprep.mubr.bf16.mxu0 0
    %572 = vmatmul.mubr.bf16.gmra.mrb[0].mxu0 %v447
    %v573 = vpop.f32.mrb[0].mxu0
    %v574 = vadd.f32 0.0, %v573
    %v575 = vpop.f32.mrb[0].mxu0
    %v576 = vpop.f32.mrb[0].mxu0
    %v577 = vadd.f32 0.0, %v576
    %v578 = vpop.f32.mrb[0].mxu0
    %579 = vmatprep.mubr.bf16.mxu0 0
    %580 = vmatmul.mubr.bf16.gmra.mrb[0].mxu0 %v448
    %v581 = vpop.f32.mrb[0].mxu0
    %v582 = vadd.f32 0.0, %v581
    %v583 = vpop.f32.mrb[0].mxu0
    %v584 = vpop.f32.mrb[0].mxu0
    %v585 = vadd.f32 0.0, %v584
    %v586 = vpop.f32.mrb[0].mxu0
    %587 = vmatprep.mubr.bf16.mxu0 0
    %588 = vmatmul.mubr.bf16.gmra.mrb[0].mxu0 %v449
    %v589 = vpop.f32.mrb[0].mxu0
    %v590 = vadd.f32 0.0, %v589
    %v591 = vpop.f32.mrb[0].mxu0
    %v592 = vpop.f32.mrb[0].mxu0
    %v593 = vadd.f32 0.0, %v592
    %v594 = vpop.f32.mrb[0].mxu0
    %595 = vmatprep.mubr.bf16.mxu0 0
    %596 = vmatmul.mubr.bf16.gmra.mrb[0].mxu0 %v450
    %v597 = vpop.f32.mrb[0].mxu0
    %v598 = vadd.f32 0.0, %v597
    %v599 = vpop.f32.mrb[0].mxu0
    %v600 = vpop.f32.mrb[0].mxu0
    %v601 = vadd.f32 0.0, %v600
    %v602 = vpop.f32.mrb[0].mxu0
    %603 = vmatprep.mubr.bf16.mxu0 0
    %604 = vmatmul.mubr.bf16.gmra.mrb[0].mxu0 %v451
    %v605 = vpop.f32.mrb[0].mxu0
    %v606 = vadd.f32 0.0, %v605
    %v607 = vpop.f32.mrb[0].mxu0
    %v608 = vpop.f32.mrb[0].mxu0
    %v609 = vadd.f32 0.0, %v608
    %v610 = vpop.f32.mrb[0].mxu0
    %611 = vmatprep.mubr.bf16.mxu0 0
    %612 = vmatmul.mubr.bf16.gmra.mrb[0].mxu0 %v452
    %v613 = vpop.f32.mrb[0].mxu0
    %v614 = vadd.f32 0.0, %v613
    %v615 = vpop.f32.mrb[0].mxu0
    %v616 = vpop.f32.mrb[0].mxu0
    %v617 = vadd.f32 0.0, %v616
    %v618 = vpop.f32.mrb[0].mxu0
    %619 = vmatprep.mubr.bf16.mxu0 0
    %620 = vmatmul.mubr.bf16.gmra.mrb[0].mxu0 %v453
    %v621 = vpop.f32.mrb[0].mxu0
    %v622 = vadd.f32 0.0, %v621
    %v623 = vpop.f32.mrb[0].mxu0
    %v624 = vpop.f32.mrb[0].mxu0
    %v625 = vadd.f32 0.0, %v624
    %v626 = vpop.f32.mrb[0].mxu0
    %627 = vmatprep.mubr.bf16.mxu0 0
    %628 = vmatmul.mubr.bf16.gmra.mrb[0].mxu0 %v454
    %v629 = vpop.f32.mrb[0].mxu0
    %v630 = vadd.f32 0.0, %v629
    %v631 = vpop.f32.mrb[0].mxu0
    %v632 = vpop.f32.mrb[0].mxu0
    %v633 = vadd.f32 0.0, %v632
    %v634 = vpop.f32.mrb[0].mxu0
    %635 = vmatprep.mubr.bf16.mxu0 0
    %636 = vmatmul.mubr.bf16.gmra.mrb[0].mxu0 %v455
    %v637 = vpop.f32.mrb[0].mxu0
    %v638 = vadd.f32 0.0, %v637
    %v639 = vpop.f32.mrb[0].mxu0
    %v640 = vpop.f32.mrb[0].mxu0
    %v641 = vadd.f32 0.0, %v640
    %v642 = vpop.f32.mrb[0].mxu0
    %643 = vmatprep.mubr.bf16.mxu0 0
    %644 = vmatmul.mubr.bf16.gmra.mrb[0].mxu0 %v456
    %v645 = vpop.f32.mrb[0].mxu0
    %v646 = vadd.f32 0.0, %v645
    %v647 = vpop.f32.mrb[0].mxu0
    %v648 = vpop.f32.mrb[0].mxu0
    %v649 = vadd.f32 0.0, %v648
    %v650 = vpop.f32.mrb[0].mxu0
    %651 = vdwg.mxu0
    %v652 = vpack.c.bf16 %v513, %v510
    %v653 = vpack.c.bf16 %v521, %v518
    %v654 = vpack.c.bf16 %v529, %v526
    %v655 = vpack.c.bf16 %v537, %v534
    %v656 = vpack.c.bf16 %v545, %v542
    %v657 = vpack.c.bf16 %v553, %v550
    %v658 = vpack.c.bf16 %v561, %v558
    %v659 = vpack.c.bf16 %v569, %v566
    %v660 = vpack.c.bf16 %v577, %v574
    %v661 = vpack.c.bf16 %v585, %v582
    %v662 = vpack.c.bf16 %v593, %v590
    %v663 = vpack.c.bf16 %v601, %v598
    %v664 = vpack.c.bf16 %v609, %v606
    %v665 = vpack.c.bf16 %v617, %v614
    %v666 = vpack.c.bf16 %v625, %v622
    %v667 = vpack.c.bf16 %v633, %v630
    %v668 = vpack.c.bf16 %v641, %v638
    %v669 = vpack.c.bf16 %v649, %v646
    %v670 = vld [vmem:[#allocation5] sm:$0xf]
    %v671 = vld [vmem:[#allocation5 + $0x4] sm:$0xf]
    %v672 = vld [vmem:[#allocation5 + $0x8] sm:$0xf]
    %v673 = vld [vmem:[#allocation5 + $0xc] sm:$0xf]
    %s674 = scalar_lea.vmem [#allocation5], 16
    %v675 = vld [vmem:[%s674] sm:$0xf]
    %v676 = vld [vmem:[%s674 + $0x4] sm:$0xf]
    %v677 = vld [vmem:[%s674 + $0x8] sm:$0xf]
    %v678 = vld [vmem:[%s674 + $0xc] sm:$0xf]
    %v683 = vunpack.c.l.b16 %v675
    %v684 = vunpack.c.l.b16 %v676
    %v685 = vunpack.c.l.b16 %v677
    %v686 = vunpack.c.l.b16 %v678
    %v687 = vpack.c.b16 %v684, %v683
    %v688 = vpack.c.b16 %v686, %v685
    %vm691 = vcmask 261120
    %v693 = vsel %vm691, %v654, 0
    %v696 = vsel %vm691, %v655, 0
    %698 = vmatprep.subr.bf16.mxu0 0
    %699 = vmatpush1.bf16.msra.mxu0 %v687
    %700 = vmatprep.subr.bf16.mxu0 0
    %701 = vmatpush1.bf16.msra.mxu0 %v688
    %702 = vmatprep.subr.bf16.mxu0 0
    %703 = vmatpush1.bf16.msra.mxu0 0
    %704 = vmatprep.subr.bf16.mxu0 0
    %705 = vmatpush1.bf16.msra.mxu0 0
    %706 = vmatprep.subr.bf16.mxu0 0
    %707 = vmatpush1.bf16.msra.mxu0 0
    %708 = vmatprep.subr.bf16.mxu0 0
    %709 = vmatpush1.bf16.msra.mxu0 0
    %710 = vmatprep.subr.bf16.mxu0 0
    %711 = vmatpush1.bf16.msra.mxu0 0
    %712 = vmatprep.subr.bf16.mxu0 0
    %713 = vmatpush1.bf16.msra.mxu0 0
    %714 = vmatprep.subr.bf16.mxu0 0
    %715 = vmatpush1.bf16.msra.mxu0 0
    %716 = vmatprep.subr.bf16.mxu0 0
    %717 = vmatpush1.bf16.msra.mxu0 0
    %718 = vmatprep.subr.bf16.mxu0 0
    %719 = vmatpush1.bf16.msra.mxu0 0
    %720 = vmatprep.subr.bf16.mxu0 0
    %721 = vmatpush1.bf16.msra.mxu0 0
    %722 = vmatprep.subr.bf16.mxu0 0
    %723 = vmatpush1.bf16.msra.mxu0 0
    %724 = vmatprep.subr.bf16.mxu0 0
    %725 = vmatpush1.bf16.msra.mxu0 0
    %726 = vmatprep.subr.bf16.mxu0 0
    %727 = vmatpush1.bf16.msra.mxu0 0
    %728 = vmatprep.subr.bf16.mxu0 0
    %729 = vmatpush1.bf16.msra.mxu0 0
    %730 = vmatprep.mubr.bf16.mxu0 0
    %731 = vmatmul.mubr.bf16.gmra.mrb[0].mxu0 %v693
    %v732 = vpop.f32.mrb[0].mxu0
    %v733 = vadd.f32 0.0, %v732
    %v734 = vpop.f32.mrb[0].mxu0
    %v735 = vpop.f32.mrb[0].mxu0
    %v736 = vadd.f32 0.0, %v735
    %v737 = vpop.f32.mrb[0].mxu0
    %738 = vmatprep.mubr.bf16.mxu0 0
    %739 = vmatmul.mubr.bf16.gmra.mrb[0].mxu0 %v696
    %v740 = vpop.f32.mrb[0].mxu0
    %v741 = vadd.f32 0.0, %v740
    %v742 = vpop.f32.mrb[0].mxu0
    %v743 = vpop.f32.mrb[0].mxu0
    %v744 = vadd.f32 0.0, %v743
    %v745 = vpop.f32.mrb[0].mxu0
    %746 = vdwg.mxu0
    %v751 = vunpack.c.l.b16 %v670
    %v752 = vunpack.c.l.b16 %v671
    %v753 = vunpack.c.l.b16 %v672
    %v754 = vunpack.c.l.b16 %v673
    %v755 = vpack.c.b16 %v752, %v751
    %v756 = vpack.c.b16 %v754, %v753
    %v760 = vsel %vm691, %v652, 0
    %v763 = vsel %vm691, %v653, 0
    %765 = vmatprep.subr.bf16.mxu0 0
    %766 = vmatpush1.bf16.msra.mxu0 %v755
    %767 = vmatprep.subr.bf16.mxu0 0
    %768 = vmatpush1.bf16.msra.mxu0 %v756
    %769 = vmatprep.subr.bf16.mxu0 0
    %770 = vmatpush1.bf16.msra.mxu0 0
    %771 = vmatprep.subr.bf16.mxu0 0
    %772 = vmatpush1.bf16.msra.mxu0 0
    %773 = vmatprep.subr.bf16.mxu0 0
    %774 = vmatpush1.bf16.msra.mxu0 0
    %775 = vmatprep.subr.bf16.mxu0 0
    %776 = vmatpush1.bf16.msra.mxu0 0
    %777 = vmatprep.subr.bf16.mxu0 0
    %778 = vmatpush1.bf16.msra.mxu0 0
    %779 = vmatprep.subr.bf16.mxu0 0
    %780 = vmatpush1.bf16.msra.mxu0 0
    %781 = vmatprep.subr.bf16.mxu0 0
    %782 = vmatpush1.bf16.msra.mxu0 0
    %783 = vmatprep.subr.bf16.mxu0 0
    %784 = vmatpush1.bf16.msra.mxu0 0
    %785 = vmatprep.subr.bf16.mxu0 0
    %786 = vmatpush1.bf16.msra.mxu0 0
    %787 = vmatprep.subr.bf16.mxu0 0
    %788 = vmatpush1.bf16.msra.mxu0 0
    %789 = vmatprep.subr.bf16.mxu0 0
    %790 = vmatpush1.bf16.msra.mxu0 0
    %791 = vmatprep.subr.bf16.mxu0 0
    %792 = vmatpush1.bf16.msra.mxu0 0
    %793 = vmatprep.subr.bf16.mxu0 0
    %794 = vmatpush1.bf16.msra.mxu0 0
    %795 = vmatprep.subr.bf16.mxu0 0
    %796 = vmatpush1.bf16.msra.mxu0 0
    %797 = vmatprep.mubr.bf16.mxu0 0
    %798 = vmatmul.mubr.bf16.gmra.mrb[0].mxu0 %v760
    %v799 = vpop.f32.mrb[0].mxu0
    %v800 = vadd.f32 %v733, %v799
    %v801 = vpop.f32.mrb[0].mxu0
    %v802 = vpop.f32.mrb[0].mxu0
    %v803 = vadd.f32 %v736, %v802
    %v804 = vpop.f32.mrb[0].mxu0
    %805 = vmatprep.mubr.bf16.mxu0 0
    %806 = vmatmul.mubr.bf16.gmra.mrb[0].mxu0 %v763
    %v807 = vpop.f32.mrb[0].mxu0
    %v808 = vadd.f32 %v741, %v807
    %v809 = vpop.f32.mrb[0].mxu0
    %v810 = vpop.f32.mrb[0].mxu0
    %v811 = vadd.f32 %v744, %v810
    %v812 = vpop.f32.mrb[0].mxu0
    %813 = vdwg.mxu0
    %s814 = scalar_lea.vmem [#allocation5], 32
    %v815 = vld [vmem:[%s814] sm:$0xf]
    %v816 = vld [vmem:[%s814 + $0x4] sm:$0xf]
    %v817 = vld [vmem:[%s814 + $0x8] sm:$0xf]
    %v818 = vld [vmem:[%s814 + $0xc] sm:$0xf]
    %v823 = vunpack.c.l.b16 %v815
    %v824 = vunpack.c.l.b16 %v816
    %v825 = vunpack.c.l.b16 %v817
    %v826 = vunpack.c.l.b16 %v818
    %v827 = vpack.c.b16 %v824, %v823
    %v828 = vpack.c.b16 %v826, %v825
    %v832 = vsel %vm691, %v656, 0
    %v835 = vsel %vm691, %v657, 0
    %837 = vmatprep.subr.bf16.mxu0 0
    %838 = vmatpush1.bf16.msra.mxu0 %v827
    %839 = vmatprep.subr.bf16.mxu0 0
    %840 = vmatpush1.bf16.msra.mxu0 %v828
    %841 = vmatprep.subr.bf16.mxu0 0
    %842 = vmatpush1.bf16.msra.mxu0 0
    %843 = vmatprep.subr.bf16.mxu0 0
    %844 = vmatpush1.bf16.msra.mxu0 0
    %845 = vmatprep.subr.bf16.mxu0 0
    %846 = vmatpush1.bf16.msra.mxu0 0
    %847 = vmatprep.subr.bf16.mxu0 0
    %848 = vmatpush1.bf16.msra.mxu0 0
    %849 = vmatprep.subr.bf16.mxu0 0
    %850 = vmatpush1.bf16.msra.mxu0 0
    %851 = vmatprep.subr.bf16.mxu0 0
    %852 = vmatpush1.bf16.msra.mxu0 0
    %853 = vmatprep.subr.bf16.mxu0 0
    %854 = vmatpush1.bf16.msra.mxu0 0
    %855 = vmatprep.subr.bf16.mxu0 0
    %856 = vmatpush1.bf16.msra.mxu0 0
    %857 = vmatprep.subr.bf16.mxu0 0
    %858 = vmatpush1.bf16.msra.mxu0 0
    %859 = vmatprep.subr.bf16.mxu0 0
    %860 = vmatpush1.bf16.msra.mxu0 0
    %861 = vmatprep.subr.bf16.mxu0 0
    %862 = vmatpush1.bf16.msra.mxu0 0
    %863 = vmatprep.subr.bf16.mxu0 0
    %864 = vmatpush1.bf16.msra.mxu0 0
    %865 = vmatprep.subr.bf16.mxu0 0
    %866 = vmatpush1.bf16.msra.mxu0 0
    %867 = vmatprep.subr.bf16.mxu0 0
    %868 = vmatpush1.bf16.msra.mxu0 0
    %869 = vmatprep.mubr.bf16.mxu0 0
    %870 = vmatmul.mubr.bf16.gmra.mrb[0].mxu0 %v832
    %v871 = vpop.f32.mrb[0].mxu0
    %v872 = vadd.f32 0.0, %v871
    %v873 = vpop.f32.mrb[0].mxu0
    %v874 = vpop.f32.mrb[0].mxu0
    %v875 = vadd.f32 0.0, %v874
    %v876 = vpop.f32.mrb[0].mxu0
    %877 = vmatprep.mubr.bf16.mxu0 0
    %878 = vmatmul.mubr.bf16.gmra.mrb[0].mxu0 %v835
    %v879 = vpop.f32.mrb[0].mxu0
    %v880 = vadd.f32 0.0, %v879
    %v881 = vpop.f32.mrb[0].mxu0
    %v882 = vpop.f32.mrb[0].mxu0
    %v883 = vadd.f32 0.0, %v882
    %v884 = vpop.f32.mrb[0].mxu0
    %885 = vdwg.mxu0
    %v886 = vadd.f32 %v800, %v872
    %v887 = vadd.f32 %v803, %v875
    %v888 = vadd.f32 %v808, %v880
    %v889 = vadd.f32 %v811, %v883
    %s890 = scalar_lea.vmem [#allocation5], 48
    %v891 = vld [vmem:[%s890] sm:$0xf]
    %v892 = vld [vmem:[%s890 + $0x4] sm:$0xf]
    %v893 = vld [vmem:[%s890 + $0x8] sm:$0xf]
    %v894 = vld [vmem:[%s890 + $0xc] sm:$0xf]
    %v899 = vunpack.c.l.b16 %v891
    %v900 = vunpack.c.l.b16 %v892
    %v901 = vunpack.c.l.b16 %v893
    %v902 = vunpack.c.l.b16 %v894
    %v903 = vpack.c.b16 %v900, %v899
    %v904 = vpack.c.b16 %v902, %v901
    %v908 = vsel %vm691, %v658, 0
    %v911 = vsel %vm691, %v659, 0
    %913 = vmatprep.subr.bf16.mxu0 0
    %914 = vmatpush1.bf16.msra.mxu0 %v903
    %915 = vmatprep.subr.bf16.mxu0 0
    %916 = vmatpush1.bf16.msra.mxu0 %v904
    %917 = vmatprep.subr.bf16.mxu0 0
    %918 = vmatpush1.bf16.msra.mxu0 0
    %919 = vmatprep.subr.bf16.mxu0 0
    %920 = vmatpush1.bf16.msra.mxu0 0
    %921 = vmatprep.subr.bf16.mxu0 0
    %922 = vmatpush1.bf16.msra.mxu0 0
    %923 = vmatprep.subr.bf16.mxu0 0
    %924 = vmatpush1.bf16.msra.mxu0 0
    %925 = vmatprep.subr.bf16.mxu0 0
    %926 = vmatpush1.bf16.msra.mxu0 0
    %927 = vmatprep.subr.bf16.mxu0 0
    %928 = vmatpush1.bf16.msra.mxu0 0
    %929 = vmatprep.subr.bf16.mxu0 0
    %930 = vmatpush1.bf16.msra.mxu0 0
    %931 = vmatprep.subr.bf16.mxu0 0
    %932 = vmatpush1.bf16.msra.mxu0 0
    %933 = vmatprep.subr.bf16.mxu0 0
    %934 = vmatpush1.bf16.msra.mxu0 0
    %935 = vmatprep.subr.bf16.mxu0 0
    %936 = vmatpush1.bf16.msra.mxu0 0
    %937 = vmatprep.subr.bf16.mxu0 0
    %938 = vmatpush1.bf16.msra.mxu0 0
    %939 = vmatprep.subr.bf16.mxu0 0
    %940 = vmatpush1.bf16.msra.mxu0 0
    %941 = vmatprep.subr.bf16.mxu0 0
    %942 = vmatpush1.bf16.msra.mxu0 0
    %943 = vmatprep.subr.bf16.mxu0 0
    %944 = vmatpush1.bf16.msra.mxu0 0
    %945 = vmatprep.mubr.bf16.mxu0 0
    %946 = vmatmul.mubr.bf16.gmra.mrb[0].mxu0 %v908
    %v947 = vpop.f32.mrb[0].mxu0
    %v948 = vadd.f32 0.0, %v947
    %v949 = vpop.f32.mrb[0].mxu0
    %v950 = vpop.f32.mrb[0].mxu0
    %v951 = vadd.f32 0.0, %v950
    %v952 = vpop.f32.mrb[0].mxu0
    %953 = vmatprep.mubr.bf16.mxu0 0
    %954 = vmatmul.mubr.bf16.gmra.mrb[0].mxu0 %v911
    %v955 = vpop.f32.mrb[0].mxu0
    %v956 = vadd.f32 0.0, %v955
    %v957 = vpop.f32.mrb[0].mxu0
    %v958 = vpop.f32.mrb[0].mxu0
    %v959 = vadd.f32 0.0, %v958
    %v960 = vpop.f32.mrb[0].mxu0
    %961 = vdwg.mxu0
    %v962 = vadd.f32 %v886, %v948
    %v963 = vadd.f32 %v887, %v951
    %v964 = vadd.f32 %v888, %v956
    %v965 = vadd.f32 %v889, %v959
    %s966 = scalar_lea.vmem [#allocation5], 64
    %v967 = vld [vmem:[%s966] sm:$0xf]
    %v968 = vld [vmem:[%s966 + $0x4] sm:$0xf]
    %v969 = vld [vmem:[%s966 + $0x8] sm:$0xf]
    %v970 = vld [vmem:[%s966 + $0xc] sm:$0xf]
    %v975 = vunpack.c.l.b16 %v967
    %v976 = vunpack.c.l.b16 %v968
    %v977 = vunpack.c.l.b16 %v969
    %v978 = vunpack.c.l.b16 %v970
    %v979 = vpack.c.b16 %v976, %v975
    %v980 = vpack.c.b16 %v978, %v977
    %v984 = vsel %vm691, %v660, 0
    %v987 = vsel %vm691, %v661, 0
    %989 = vmatprep.subr.bf16.mxu0 0
    %990 = vmatpush1.bf16.msra.mxu0 %v979
    %991 = vmatprep.subr.bf16.mxu0 0
    %992 = vmatpush1.bf16.msra.mxu0 %v980
    %993 = vmatprep.subr.bf16.mxu0 0
    %994 = vmatpush1.bf16.msra.mxu0 0
    %995 = vmatprep.subr.bf16.mxu0 0
    %996 = vmatpush1.bf16.msra.mxu0 0
    %997 = vmatprep.subr.bf16.mxu0 0
    %998 = vmatpush1.bf16.msra.mxu0 0
    %999 = vmatprep.subr.bf16.mxu0 0
    %1000 = vmatpush1.bf16.msra.mxu0 0
    %1001 = vmatprep.subr.bf16.mxu0 0
    %1002 = vmatpush1.bf16.msra.mxu0 0
    %1003 = vmatprep.subr.bf16.mxu0 0
    %1004 = vmatpush1.bf16.msra.mxu0 0
    %1005 = vmatprep.subr.bf16.mxu0 0
    %1006 = vmatpush1.bf16.msra.mxu0 0
    %1007 = vmatprep.subr.bf16.mxu0 0
    %1008 = vmatpush1.bf16.msra.mxu0 0
    %1009 = vmatprep.subr.bf16.mxu0 0
    %1010 = vmatpush1.bf16.msra.mxu0 0
    %1011 = vmatprep.subr.bf16.mxu0 0
    %1012 = vmatpush1.bf16.msra.mxu0 0
    %1013 = vmatprep.subr.bf16.mxu0 0
    %1014 = vmatpush1.bf16.msra.mxu0 0
    %1015 = vmatprep.subr.bf16.mxu0 0
    %1016 = vmatpush1.bf16.msra.mxu0 0
    %1017 = vmatprep.subr.bf16.mxu0 0
    %1018 = vmatpush1.bf16.msra.mxu0 0
    %1019 = vmatprep.subr.bf16.mxu0 0
    %1020 = vmatpush1.bf16.msra.mxu0 0
    %1021 = vmatprep.mubr.bf16.mxu0 0
    %1022 = vmatmul.mubr.bf16.gmra.mrb[0].mxu0 %v984
    %v1023 = vpop.f32.mrb[0].mxu0
    %v1024 = vadd.f32 0.0, %v1023
    %v1025 = vpop.f32.mrb[0].mxu0
    %v1026 = vpop.f32.mrb[0].mxu0
    %v1027 = vadd.f32 0.0, %v1026
    %v1028 = vpop.f32.mrb[0].mxu0
    %1029 = vmatprep.mubr.bf16.mxu0 0
    %1030 = vmatmul.mubr.bf16.gmra.mrb[0].mxu0 %v987
    %v1031 = vpop.f32.mrb[0].mxu0
    %v1032 = vadd.f32 0.0, %v1031
    %v1033 = vpop.f32.mrb[0].mxu0
    %v1034 = vpop.f32.mrb[0].mxu0
    %v1035 = vadd.f32 0.0, %v1034
    %v1036 = vpop.f32.mrb[0].mxu0
    %1037 = vdwg.mxu0
    %v1038 = vadd.f32 %v962, %v1024
    %v1039 = vadd.f32 %v963, %v1027
    %v1040 = vadd.f32 %v964, %v1032
    %v1041 = vadd.f32 %v965, %v1035
    %s1042 = scalar_lea.vmem [#allocation5], 80
    %v1043 = vld [vmem:[%s1042] sm:$0xf]
    %v1044 = vld [vmem:[%s1042 + $0x4] sm:$0xf]
    %v1045 = vld [vmem:[%s1042 + $0x8] sm:$0xf]
    %v1046 = vld [vmem:[%s1042 + $0xc] sm:$0xf]
    %v1051 = vunpack.c.l.b16 %v1043
    %v1052 = vunpack.c.l.b16 %v1044
    %v1053 = vunpack.c.l.b16 %v1045
    %v1054 = vunpack.c.l.b16 %v1046
    %v1055 = vpack.c.b16 %v1052, %v1051
    %v1056 = vpack.c.b16 %v1054, %v1053
    %v1060 = vsel %vm691, %v662, 0
    %v1063 = vsel %vm691, %v663, 0
    %1065 = vmatprep.subr.bf16.mxu0 0
    %1066 = vmatpush1.bf16.msra.mxu0 %v1055
    %1067 = vmatprep.subr.bf16.mxu0 0
    %1068 = vmatpush1.bf16.msra.mxu0 %v1056
    %1069 = vmatprep.subr.bf16.mxu0 0
    %1070 = vmatpush1.bf16.msra.mxu0 0
    %1071 = vmatprep.subr.bf16.mxu0 0
    %1072 = vmatpush1.bf16.msra.mxu0 0
    %1073 = vmatprep.subr.bf16.mxu0 0
    %1074 = vmatpush1.bf16.msra.mxu0 0
    %1075 = vmatprep.subr.bf16.mxu0 0
    %1076 = vmatpush1.bf16.msra.mxu0 0
    %1077 = vmatprep.subr.bf16.mxu0 0
    %1078 = vmatpush1.bf16.msra.mxu0 0
    %1079 = vmatprep.subr.bf16.mxu0 0
    %1080 = vmatpush1.bf16.msra.mxu0 0
    %1081 = vmatprep.subr.bf16.mxu0 0
    %1082 = vmatpush1.bf16.msra.mxu0 0
    %1083 = vmatprep.subr.bf16.mxu0 0
    %1084 = vmatpush1.bf16.msra.mxu0 0
    %1085 = vmatprep.subr.bf16.mxu0 0
    %1086 = vmatpush1.bf16.msra.mxu0 0
    %1087 = vmatprep.subr.bf16.mxu0 0
    %1088 = vmatpush1.bf16.msra.mxu0 0
    %1089 = vmatprep.subr.bf16.mxu0 0
    %1090 = vmatpush1.bf16.msra.mxu0 0
    %1091 = vmatprep.subr.bf16.mxu0 0
    %1092 = vmatpush1.bf16.msra.mxu0 0
    %1093 = vmatprep.subr.bf16.mxu0 0
    %1094 = vmatpush1.bf16.msra.mxu0 0
    %1095 = vmatprep.subr.bf16.mxu0 0
    %1096 = vmatpush1.bf16.msra.mxu0 0
    %1097 = vmatprep.mubr.bf16.mxu0 0
    %1098 = vmatmul.mubr.bf16.gmra.mrb[0].mxu0 %v1060
    %v1099 = vpop.f32.mrb[0].mxu0
    %v1100 = vadd.f32 0.0, %v1099
    %v1101 = vpop.f32.mrb[0].mxu0
    %v1102 = vpop.f32.mrb[0].mxu0
    %v1103 = vadd.f32 0.0, %v1102
    %v1104 = vpop.f32.mrb[0].mxu0
    %1105 = vmatprep.mubr.bf16.mxu0 0
    %1106 = vmatmul.mubr.bf16.gmra.mrb[0].mxu0 %v1063
    %v1107 = vpop.f32.mrb[0].mxu0
    %v1108 = vadd.f32 0.0, %v1107
    %v1109 = vpop.f32.mrb[0].mxu0
    %v1110 = vpop.f32.mrb[0].mxu0
    %v1111 = vadd.f32 0.0, %v1110
    %v1112 = vpop.f32.mrb[0].mxu0
    %1113 = vdwg.mxu0
    %v1114 = vadd.f32 %v1038, %v1100
    %v1115 = vadd.f32 %v1039, %v1103
    %v1116 = vadd.f32 %v1040, %v1108
    %v1117 = vadd.f32 %v1041, %v1111
    %s1118 = scalar_lea.vmem [#allocation5], 96
    %v1119 = vld [vmem:[%s1118] sm:$0xf]
    %v1120 = vld [vmem:[%s1118 + $0x4] sm:$0xf]
    %v1121 = vld [vmem:[%s1118 + $0x8] sm:$0xf]
    %v1122 = vld [vmem:[%s1118 + $0xc] sm:$0xf]
    %v1127 = vunpack.c.l.b16 %v1119
    %v1128 = vunpack.c.l.b16 %v1120
    %v1129 = vunpack.c.l.b16 %v1121
    %v1130 = vunpack.c.l.b16 %v1122
    %v1131 = vpack.c.b16 %v1128, %v1127
    %v1132 = vpack.c.b16 %v1130, %v1129
    %v1136 = vsel %vm691, %v664, 0
    %v1139 = vsel %vm691, %v665, 0
    %1141 = vmatprep.subr.bf16.mxu0 0
    %1142 = vmatpush1.bf16.msra.mxu0 %v1131
    %1143 = vmatprep.subr.bf16.mxu0 0
    %1144 = vmatpush1.bf16.msra.mxu0 %v1132
    %1145 = vmatprep.subr.bf16.mxu0 0
    %1146 = vmatpush1.bf16.msra.mxu0 0
    %1147 = vmatprep.subr.bf16.mxu0 0
    %1148 = vmatpush1.bf16.msra.mxu0 0
    %1149 = vmatprep.subr.bf16.mxu0 0
    %1150 = vmatpush1.bf16.msra.mxu0 0
    %1151 = vmatprep.subr.bf16.mxu0 0
    %1152 = vmatpush1.bf16.msra.mxu0 0
    %1153 = vmatprep.subr.bf16.mxu0 0
    %1154 = vmatpush1.bf16.msra.mxu0 0
    %1155 = vmatprep.subr.bf16.mxu0 0
    %1156 = vmatpush1.bf16.msra.mxu0 0
    %1157 = vmatprep.subr.bf16.mxu0 0
    %1158 = vmatpush1.bf16.msra.mxu0 0
    %1159 = vmatprep.subr.bf16.mxu0 0
    %1160 = vmatpush1.bf16.msra.mxu0 0
    %1161 = vmatprep.subr.bf16.mxu0 0
    %1162 = vmatpush1.bf16.msra.mxu0 0
    %1163 = vmatprep.subr.bf16.mxu0 0
    %1164 = vmatpush1.bf16.msra.mxu0 0
    %1165 = vmatprep.subr.bf16.mxu0 0
    %1166 = vmatpush1.bf16.msra.mxu0 0
    %1167 = vmatprep.subr.bf16.mxu0 0
    %1168 = vmatpush1.bf16.msra.mxu0 0
    %1169 = vmatprep.subr.bf16.mxu0 0
    %1170 = vmatpush1.bf16.msra.mxu0 0
    %1171 = vmatprep.subr.bf16.mxu0 0
    %1172 = vmatpush1.bf16.msra.mxu0 0
    %1173 = vmatprep.mubr.bf16.mxu0 0
    %1174 = vmatmul.mubr.bf16.gmra.mrb[0].mxu0 %v1136
    %v1175 = vpop.f32.mrb[0].mxu0
    %v1176 = vadd.f32 0.0, %v1175
    %v1177 = vpop.f32.mrb[0].mxu0
    %v1178 = vpop.f32.mrb[0].mxu0
    %v1179 = vadd.f32 0.0, %v1178
    %v1180 = vpop.f32.mrb[0].mxu0
    %1181 = vmatprep.mubr.bf16.mxu0 0
    %1182 = vmatmul.mubr.bf16.gmra.mrb[0].mxu0 %v1139
    %v1183 = vpop.f32.mrb[0].mxu0
    %v1184 = vadd.f32 0.0, %v1183
    %v1185 = vpop.f32.mrb[0].mxu0
    %v1186 = vpop.f32.mrb[0].mxu0
    %v1187 = vadd.f32 0.0, %v1186
    %v1188 = vpop.f32.mrb[0].mxu0
    %1189 = vdwg.mxu0
    %v1190 = vadd.f32 %v1114, %v1176
    %v1191 = vadd.f32 %v1115, %v1179
    %v1192 = vadd.f32 %v1116, %v1184
    %v1193 = vadd.f32 %v1117, %v1187
    %s1194 = scalar_lea.vmem [#allocation5], 112
    %v1195 = vld [vmem:[%s1194] sm:$0xf]
    %v1196 = vld [vmem:[%s1194 + $0x4] sm:$0xf]
    %v1197 = vld [vmem:[%s1194 + $0x8] sm:$0xf]
    %v1198 = vld [vmem:[%s1194 + $0xc] sm:$0xf]
    %v1203 = vunpack.c.l.b16 %v1195
    %v1204 = vunpack.c.l.b16 %v1196
    %v1205 = vunpack.c.l.b16 %v1197
    %v1206 = vunpack.c.l.b16 %v1198
    %v1207 = vpack.c.b16 %v1204, %v1203
    %v1208 = vpack.c.b16 %v1206, %v1205
    %v1212 = vsel %vm691, %v666, 0
    %v1215 = vsel %vm691, %v667, 0
    %1217 = vmatprep.subr.bf16.mxu0 0
    %1218 = vmatpush1.bf16.msra.mxu0 %v1207
    %1219 = vmatprep.subr.bf16.mxu0 0
    %1220 = vmatpush1.bf16.msra.mxu0 %v1208
    %1221 = vmatprep.subr.bf16.mxu0 0
    %1222 = vmatpush1.bf16.msra.mxu0 0
    %1223 = vmatprep.subr.bf16.mxu0 0
    %1224 = vmatpush1.bf16.msra.mxu0 0
    %1225 = vmatprep.subr.bf16.mxu0 0
    %1226 = vmatpush1.bf16.msra.mxu0 0
    %1227 = vmatprep.subr.bf16.mxu0 0
    %1228 = vmatpush1.bf16.msra.mxu0 0
    %1229 = vmatprep.subr.bf16.mxu0 0
    %1230 = vmatpush1.bf16.msra.mxu0 0
    %1231 = vmatprep.subr.bf16.mxu0 0
    %1232 = vmatpush1.bf16.msra.mxu0 0
    %1233 = vmatprep.subr.bf16.mxu0 0
    %1234 = vmatpush1.bf16.msra.mxu0 0
    %1235 = vmatprep.subr.bf16.mxu0 0
    %1236 = vmatpush1.bf16.msra.mxu0 0
    %1237 = vmatprep.subr.bf16.mxu0 0
    %1238 = vmatpush1.bf16.msra.mxu0 0
    %1239 = vmatprep.subr.bf16.mxu0 0
    %1240 = vmatpush1.bf16.msra.mxu0 0
    %1241 = vmatprep.subr.bf16.mxu0 0
    %1242 = vmatpush1.bf16.msra.mxu0 0
    %1243 = vmatprep.subr.bf16.mxu0 0
    %1244 = vmatpush1.bf16.msra.mxu0 0
    %1245 = vmatprep.subr.bf16.mxu0 0
    %1246 = vmatpush1.bf16.msra.mxu0 0
    %1247 = vmatprep.subr.bf16.mxu0 0
    %1248 = vmatpush1.bf16.msra.mxu0 0
    %1249 = vmatprep.mubr.bf16.mxu0 0
    %1250 = vmatmul.mubr.bf16.gmra.mrb[0].mxu0 %v1212
    %v1251 = vpop.f32.mrb[0].mxu0
    %v1252 = vadd.f32 0.0, %v1251
    %v1253 = vpop.f32.mrb[0].mxu0
    %v1254 = vpop.f32.mrb[0].mxu0
    %v1255 = vadd.f32 0.0, %v1254
    %v1256 = vpop.f32.mrb[0].mxu0
    %1257 = vmatprep.mubr.bf16.mxu0 0
    %1258 = vmatmul.mubr.bf16.gmra.mrb[0].mxu0 %v1215
    %v1259 = vpop.f32.mrb[0].mxu0
    %v1260 = vadd.f32 0.0, %v1259
    %v1261 = vpop.f32.mrb[0].mxu0
    %v1262 = vpop.f32.mrb[0].mxu0
    %v1263 = vadd.f32 0.0, %v1262
    %v1264 = vpop.f32.mrb[0].mxu0
    %1265 = vdwg.mxu0
    %v1266 = vadd.f32 %v1190, %v1252
    %v1267 = vadd.f32 %v1191, %v1255
    %v1268 = vadd.f32 %v1192, %v1260
    %v1269 = vadd.f32 %v1193, %v1263
    %s1270 = scalar_lea.vmem [#allocation5], 128
    %v1271 = vld [vmem:[%s1270] sm:$0xf]
    %v1272 = vld [vmem:[%s1270 + $0x4] sm:$0xf]
    %v1273 = vld [vmem:[%s1270 + $0x8] sm:$0xf]
    %v1274 = vld [vmem:[%s1270 + $0xc] sm:$0xf]
    %v1279 = vunpack.c.l.b16 %v1271
    %v1280 = vunpack.c.l.b16 %v1272
    %v1281 = vunpack.c.l.b16 %v1273
    %v1282 = vunpack.c.l.b16 %v1274
    %v1283 = vpack.c.b16 %v1280, %v1279
    %v1284 = vpack.c.b16 %v1282, %v1281
    %v1288 = vsel %vm691, %v668, 0
    %v1291 = vsel %vm691, %v669, 0
    %1293 = vmatprep.subr.bf16.mxu0 0
    %1294 = vmatpush1.bf16.msra.mxu0 %v1283
    %1295 = vmatprep.subr.bf16.mxu0 0
    %1296 = vmatpush1.bf16.msra.mxu0 %v1284
    %1297 = vmatprep.subr.bf16.mxu0 0
    %1298 = vmatpush1.bf16.msra.mxu0 0
    %1299 = vmatprep.subr.bf16.mxu0 0
    %1300 = vmatpush1.bf16.msra.mxu0 0
    %1301 = vmatprep.subr.bf16.mxu0 0
    %1302 = vmatpush1.bf16.msra.mxu0 0
    %1303 = vmatprep.subr.bf16.mxu0 0
    %1304 = vmatpush1.bf16.msra.mxu0 0
    %1305 = vmatprep.subr.bf16.mxu0 0
    %1306 = vmatpush1.bf16.msra.mxu0 0
    %1307 = vmatprep.subr.bf16.mxu0 0
    %1308 = vmatpush1.bf16.msra.mxu0 0
    %1309 = vmatprep.subr.bf16.mxu0 0
    %1310 = vmatpush1.bf16.msra.mxu0 0
    %1311 = vmatprep.subr.bf16.mxu0 0
    %1312 = vmatpush1.bf16.msra.mxu0 0
    %1313 = vmatprep.subr.bf16.mxu0 0
    %1314 = vmatpush1.bf16.msra.mxu0 0
    %1315 = vmatprep.subr.bf16.mxu0 0
    %1316 = vmatpush1.bf16.msra.mxu0 0
    %1317 = vmatprep.subr.bf16.mxu0 0
    %1318 = vmatpush1.bf16.msra.mxu0 0
    %1319 = vmatprep.subr.bf16.mxu0 0
    %1320 = vmatpush1.bf16.msra.mxu0 0
    %1321 = vmatprep.subr.bf16.mxu0 0
    %1322 = vmatpush1.bf16.msra.mxu0 0
    %1323 = vmatprep.subr.bf16.mxu0 0
    %1324 = vmatpush1.bf16.msra.mxu0 0
    %1325 = vmatprep.mubr.bf16.mxu0 0
    %1326 = vmatmul.mubr.bf16.gmra.mrb[0].mxu0 %v1288
    %v1327 = vpop.f32.mrb[0].mxu0
    %v1328 = vadd.f32 0.0, %v1327
    %v1329 = vpop.f32.mrb[0].mxu0
    %v1330 = vpop.f32.mrb[0].mxu0
    %v1331 = vadd.f32 0.0, %v1330
    %v1332 = vpop.f32.mrb[0].mxu0
    %1333 = vmatprep.mubr.bf16.mxu0 0
    %1334 = vmatmul.mubr.bf16.gmra.mrb[0].mxu0 %v1291
    %v1335 = vpop.f32.mrb[0].mxu0
    %v1336 = vadd.f32 0.0, %v1335
    %v1337 = vpop.f32.mrb[0].mxu0
    %v1338 = vpop.f32.mrb[0].mxu0
    %v1339 = vadd.f32 0.0, %v1338
    %v1340 = vpop.f32.mrb[0].mxu0
    %1341 = vdwg.mxu0
    %v1342 = vadd.f32 %v1266, %v1328
    %v1343 = vadd.f32 %v1267, %v1331
    %v1344 = vadd.f32 %v1268, %v1336
    %v1345 = vadd.f32 %v1269, %v1339
    %v1346 = vld [vmem:[%s5] sm:$0x1]
    %v1348 = vlaneseq
    %v1349 = vshrl.u32 %v1348, 7
    %v1350 = vsub.s32 0, %v1349
    %v1351 = vrot.slane %v1346, %v1350
    %v1353 = vadd.f32 %v1342, %v1351
    %v1354 = vadd.f32 %v1343, %v1351
    %v1355 = vadd.f32 %v1344, %v1351
    %v1356 = vadd.f32 %v1345, %v1351
    %v1357 = vmax.f32 %v1353, 0.0
    %v1358 = vmax.f32 %v1354, 0.0
    %v1359 = vmax.f32 %v1355, 0.0
    %v1360 = vmax.f32 %v1356, 0.0
    %v1361 = vpack.c.bf16 %v1358, %v1357
    %v1362 = vpack.c.bf16 %v1360, %v1359
    %v1363 = vld [vmem:[%s6] sm:$0xf]
    %v1364 = vld [vmem:[%s6 + $0x4] sm:$0xf]
    %v1365 = vld [vmem:[%s6 + $0x8] sm:$0xf]
    %v1366 = vld [vmem:[%s6 + $0xc] sm:$0xf]
    %v1367 = vld [vmem:[%s6 + $0x10] sm:$0xf]
    %v1368 = vld [vmem:[%s6 + $0x14] sm:$0xf]
    %v1369 = vld [vmem:[%s6 + $0x18] sm:$0xf]
    %v1370 = vld [vmem:[%s6 + $0x1c] sm:$0xf]
    %v1371 = vld [vmem:[%s6 + $0x20] sm:$0xf]
    %v1372 = vld [vmem:[%s6 + $0x24] sm:$0xf]
    %v1373 = vld [vmem:[%s6 + $0x28] sm:$0xf]
    %v1374 = vld [vmem:[%s6 + $0x2c] sm:$0xf]
    %v1375 = vld [vmem:[%s6 + $0x30] sm:$0xf]
    %v1376 = vld [vmem:[%s6 + $0x34] sm:$0xf]
    %v1377 = vld [vmem:[%s6 + $0x38] sm:$0xf]
    %v1378 = vld [vmem:[%s6 + $0x3c] sm:$0xf]
    %v1379 = vld [vmem:[%s6 + $0x40] sm:$0xf]
    %v1380 = vld [vmem:[%s6 + $0x44] sm:$0xf]
    %v1399 = vunpack.c.l.b16 %v1363
    %v1400 = vunpack.c.l.b16 %v1364
    %v1401 = vunpack.c.l.b16 %v1365
    %v1402 = vunpack.c.l.b16 %v1366
    %v1403 = vunpack.c.l.b16 %v1367
    %v1404 = vunpack.c.l.b16 %v1368
    %v1405 = vunpack.c.l.b16 %v1369
    %v1406 = vunpack.c.l.b16 %v1370
    %v1407 = vunpack.c.l.b16 %v1371
    %v1408 = vunpack.c.l.b16 %v1372
    %v1409 = vunpack.c.l.b16 %v1373
    %v1410 = vunpack.c.l.b16 %v1374
    %v1411 = vunpack.c.l.b16 %v1375
    %v1412 = vunpack.c.l.b16 %v1376
    %v1413 = vunpack.c.l.b16 %v1377
    %v1414 = vunpack.c.l.b16 %v1378
    %v1415 = vunpack.c.l.b16 %v1379
    %v1416 = vunpack.c.l.b16 %v1380
    %v1417 = vpack.c.b16 %v1400, %v1399
    %v1418 = vpack.c.b16 %v1402, %v1401
    %v1419 = vpack.c.b16 %v1404, %v1403
    %v1420 = vpack.c.b16 %v1406, %v1405
    %v1421 = vpack.c.b16 %v1408, %v1407
    %v1422 = vpack.c.b16 %v1410, %v1409
    %v1423 = vpack.c.b16 %v1412, %v1411
    %v1424 = vpack.c.b16 %v1414, %v1413
    %v1425 = vpack.c.b16 %v1416, %v1415
    %v1427 = vsel %vm691, %v1417, 0
    %v1430 = vsel %vm691, %v1418, 0
    %v1433 = vsel %vm691, %v1419, 0
    %v1436 = vsel %vm691, %v1420, 0
    %v1439 = vsel %vm691, %v1421, 0
    %v1442 = vsel %vm691, %v1422, 0
    %v1445 = vsel %vm691, %v1423, 0
    %v1448 = vsel %vm691, %v1424, 0
    %v1451 = vsel %vm691, %v1425, 0
    %1453 = vmatprep.subr.bf16.mxu0 0
    %1454 = vmatpush1.bf16.msra.mxu0 %v1361
    %1455 = vmatprep.subr.bf16.mxu0 0
    %1456 = vmatpush1.bf16.msra.mxu0 %v1362
    %1457 = vmatprep.subr.bf16.mxu0 0
    %1458 = vmatpush1.bf16.msra.mxu0 0
    %1459 = vmatprep.subr.bf16.mxu0 0
    %1460 = vmatpush1.bf16.msra.mxu0 0
    %1461 = vmatprep.subr.bf16.mxu0 0
    %1462 = vmatpush1.bf16.msra.mxu0 0
    %1463 = vmatprep.subr.bf16.mxu0 0
    %1464 = vmatpush1.bf16.msra.mxu0 0
    %1465 = vmatprep.subr.bf16.mxu0 0
    %1466 = vmatpush1.bf16.msra.mxu0 0
    %1467 = vmatprep.subr.bf16.mxu0 0
    %1468 = vmatpush1.bf16.msra.mxu0 0
    %1469 = vmatprep.subr.bf16.mxu0 0
    %1470 = vmatpush1.bf16.msra.mxu0 0
    %1471 = vmatprep.subr.bf16.mxu0 0
    %1472 = vmatpush1.bf16.msra.mxu0 0
    %1473 = vmatprep.subr.bf16.mxu0 0
    %1474 = vmatpush1.bf16.msra.mxu0 0
    %1475 = vmatprep.subr.bf16.mxu0 0
    %1476 = vmatpush1.bf16.msra.mxu0 0
    %1477 = vmatprep.subr.bf16.mxu0 0
    %1478 = vmatpush1.bf16.msra.mxu0 0
    %1479 = vmatprep.subr.bf16.mxu0 0
    %1480 = vmatpush1.bf16.msra.mxu0 0
    %1481 = vmatprep.subr.bf16.mxu0 0
    %1482 = vmatpush1.bf16.msra.mxu0 0
    %1483 = vmatprep.subr.bf16.mxu0 0
    %1484 = vmatpush1.bf16.msra.mxu0 0
    %1485 = vmatprep.mubr.bf16.mxu0 0
    %1486 = vmatmul.mubr.bf16.gmra.mrb[0].mxu0 %v1427
    %v1487 = vpop.f32.mrb[0].mxu0
    %v1488 = vadd.f32 0.0, %v1487
    %v1489 = vpop.f32.mrb[0].mxu0
    %v1490 = vpop.f32.mrb[0].mxu0
    %v1491 = vadd.f32 0.0, %v1490
    %v1492 = vpop.f32.mrb[0].mxu0
    %1493 = vmatprep.mubr.bf16.mxu0 0
    %1494 = vmatmul.mubr.bf16.gmra.mrb[0].mxu0 %v1430
    %v1495 = vpop.f32.mrb[0].mxu0
    %v1496 = vadd.f32 0.0, %v1495
    %v1497 = vpop.f32.mrb[0].mxu0
    %v1498 = vpop.f32.mrb[0].mxu0
    %v1499 = vadd.f32 0.0, %v1498
    %v1500 = vpop.f32.mrb[0].mxu0
    %1501 = vmatprep.mubr.bf16.mxu0 0
    %1502 = vmatmul.mubr.bf16.gmra.mrb[0].mxu0 %v1433
    %v1503 = vpop.f32.mrb[0].mxu0
    %v1504 = vadd.f32 0.0, %v1503
    %v1505 = vpop.f32.mrb[0].mxu0
    %v1506 = vpop.f32.mrb[0].mxu0
    %v1507 = vadd.f32 0.0, %v1506
    %v1508 = vpop.f32.mrb[0].mxu0
    %1509 = vmatprep.mubr.bf16.mxu0 0
    %1510 = vmatmul.mubr.bf16.gmra.mrb[0].mxu0 %v1436
    %v1511 = vpop.f32.mrb[0].mxu0
    %v1512 = vadd.f32 0.0, %v1511
    %v1513 = vpop.f32.mrb[0].mxu0
    %v1514 = vpop.f32.mrb[0].mxu0
    %v1515 = vadd.f32 0.0, %v1514
    %v1516 = vpop.f32.mrb[0].mxu0
    %1517 = vmatprep.mubr.bf16.mxu0 0
    %1518 = vmatmul.mubr.bf16.gmra.mrb[0].mxu0 %v1439
    %v1519 = vpop.f32.mrb[0].mxu0
    %v1520 = vadd.f32 0.0, %v1519
    %v1521 = vpop.f32.mrb[0].mxu0
    %v1522 = vpop.f32.mrb[0].mxu0
    %v1523 = vadd.f32 0.0, %v1522
    %v1524 = vpop.f32.mrb[0].mxu0
    %1525 = vmatprep.mubr.bf16.mxu0 0
    %1526 = vmatmul.mubr.bf16.gmra.mrb[0].mxu0 %v1442
    %v1527 = vpop.f32.mrb[0].mxu0
    %v1528 = vadd.f32 0.0, %v1527
    %v1529 = vpop.f32.mrb[0].mxu0
    %v1530 = vpop.f32.mrb[0].mxu0
    %v1531 = vadd.f32 0.0, %v1530
    %v1532 = vpop.f32.mrb[0].mxu0
    %1533 = vmatprep.mubr.bf16.mxu0 0
    %1534 = vmatmul.mubr.bf16.gmra.mrb[0].mxu0 %v1445
    %v1535 = vpop.f32.mrb[0].mxu0
    %v1536 = vadd.f32 0.0, %v1535
    %v1537 = vpop.f32.mrb[0].mxu0
    %v1538 = vpop.f32.mrb[0].mxu0
    %v1539 = vadd.f32 0.0, %v1538
    %v1540 = vpop.f32.mrb[0].mxu0
    %1541 = vmatprep.mubr.bf16.mxu0 0
    %1542 = vmatmul.mubr.bf16.gmra.mrb[0].mxu0 %v1448
    %v1543 = vpop.f32.mrb[0].mxu0
    %v1544 = vadd.f32 0.0, %v1543
    %v1545 = vpop.f32.mrb[0].mxu0
    %v1546 = vpop.f32.mrb[0].mxu0
    %v1547 = vadd.f32 0.0, %v1546
    %v1548 = vpop.f32.mrb[0].mxu0
    %1549 = vmatprep.mubr.bf16.mxu0 0
    %1550 = vmatmul.mubr.bf16.gmra.mrb[0].mxu0 %v1451
    %v1551 = vpop.f32.mrb[0].mxu0
    %v1552 = vadd.f32 0.0, %v1551
    %v1553 = vpop.f32.mrb[0].mxu0
    %v1554 = vpop.f32.mrb[0].mxu0
    %v1555 = vadd.f32 0.0, %v1554
    %v1556 = vpop.f32.mrb[0].mxu0
    %1557 = vdwg.mxu0
    %v1558 = vpack.c.bf16 %v1491, %v1488
    %v1559 = vpack.c.bf16 %v1499, %v1496
    %v1560 = vpack.c.bf16 %v1507, %v1504
    %v1561 = vpack.c.bf16 %v1515, %v1512
    %v1562 = vpack.c.bf16 %v1523, %v1520
    %v1563 = vpack.c.bf16 %v1531, %v1528
    %v1564 = vpack.c.bf16 %v1539, %v1536
    %v1565 = vpack.c.bf16 %v1547, %v1544
    %v1566 = vpack.c.bf16 %v1555, %v1552
    %v1567 = vld [vmem:[#allocation7] sm:$0xf]
    %v1568 = vld [vmem:[#allocation7 + $0x4] sm:$0xf]
    %v1569 = vld [vmem:[#allocation7 + $0x8] sm:$0xf]
    %v1570 = vld [vmem:[#allocation7 + $0xc] sm:$0xf]
    %v1571 = vld [vmem:[#allocation7 + $0x10] sm:$0xf]
    %v1572 = vld [vmem:[#allocation7 + $0x14] sm:$0xf]
    %v1573 = vld [vmem:[#allocation7 + $0x18] sm:$0xf]
    %v1574 = vld [vmem:[#allocation7 + $0x1c] sm:$0xf]
    %s1575 = scalar_lea.vmem [#allocation7], 32
    %v1576 = vld [vmem:[%s1575] sm:$0xf]
    %v1577 = vld [vmem:[%s1575 + $0x4] sm:$0xf]
    %v1578 = vld [vmem:[%s1575 + $0x8] sm:$0xf]
    %v1579 = vld [vmem:[%s1575 + $0xc] sm:$0xf]
    %v1580 = vld [vmem:[%s1575 + $0x10] sm:$0xf]
    %v1581 = vld [vmem:[%s1575 + $0x14] sm:$0xf]
    %v1582 = vld [vmem:[%s1575 + $0x18] sm:$0xf]
    %v1583 = vld [vmem:[%s1575 + $0x1c] sm:$0xf]
    %v1592 = vunpack.c.l.b16 %v1576
    %v1593 = vunpack.c.l.b16 %v1577
    %v1594 = vunpack.c.l.b16 %v1578
    %v1595 = vunpack.c.l.b16 %v1579
    %v1596 = vunpack.c.l.b16 %v1580
    %v1597 = vunpack.c.l.b16 %v1581
    %v1598 = vunpack.c.l.b16 %v1582
    %v1599 = vunpack.c.l.b16 %v1583
    %v1600 = vpack.c.b16 %v1593, %v1592
    %v1601 = vpack.c.b16 %v1595, %v1594
    %v1602 = vpack.c.b16 %v1597, %v1596
    %v1603 = vpack.c.b16 %v1599, %v1598
    %vm1608 = vcmask 523264
    %v1610 = vsel %vm1608, %v1559, 0
    %1612 = vmatprep.subr.bf16.mxu0 0
    %1613 = vmatpush1.bf16.msra.mxu0 %v1600
    %1614 = vmatprep.subr.bf16.mxu0 0
    %1615 = vmatpush1.bf16.msra.mxu0 %v1601
    %1616 = vmatprep.subr.bf16.mxu0 0
    %1617 = vmatpush1.bf16.msra.mxu0 %v1602
    %1618 = vmatprep.subr.bf16.mxu0 0
    %1619 = vmatpush1.bf16.msra.mxu0 %v1603
    %1620 = vmatprep.subr.bf16.mxu0 0
    %1621 = vmatpush1.bf16.msra.mxu0 0
    %1622 = vmatprep.subr.bf16.mxu0 0
    %1623 = vmatpush1.bf16.msra.mxu0 0
    %1624 = vmatprep.subr.bf16.mxu0 0
    %1625 = vmatpush1.bf16.msra.mxu0 0
    %1626 = vmatprep.subr.bf16.mxu0 0
    %1627 = vmatpush1.bf16.msra.mxu0 0
    %1628 = vmatprep.subr.bf16.mxu0 0
    %1629 = vmatpush1.bf16.msra.mxu0 0
    %1630 = vmatprep.subr.bf16.mxu0 0
    %1631 = vmatpush1.bf16.msra.mxu0 0
    %1632 = vmatprep.subr.bf16.mxu0 0
    %1633 = vmatpush1.bf16.msra.mxu0 0
    %1634 = vmatprep.subr.bf16.mxu0 0
    %1635 = vmatpush1.bf16.msra.mxu0 0
    %1636 = vmatprep.subr.bf16.mxu0 0
    %1637 = vmatpush1.bf16.msra.mxu0 0
    %1638 = vmatprep.subr.bf16.mxu0 0
    %1639 = vmatpush1.bf16.msra.mxu0 0
    %1640 = vmatprep.subr.bf16.mxu0 0
    %1641 = vmatpush1.bf16.msra.mxu0 0
    %1642 = vmatprep.subr.bf16.mxu0 0
    %1643 = vmatpush1.bf16.msra.mxu0 0
    %1644 = vmatprep.mubr.bf16.mxu0 0
    %1645 = vmatmul.mubr.bf16.gmra.mrb[0].mxu0 %v1610
    %v1646 = vpop.f32.mrb[0].mxu0
    %v1647 = vadd.f32 0.0, %v1646
    %v1648 = vpop.f32.mrb[0].mxu0
    %v1649 = vpop.f32.mrb[0].mxu0
    %v1650 = vadd.f32 0.0, %v1649
    %v1651 = vpop.f32.mrb[0].mxu0
    %1652 = vdwg.mxu0
    %v1661 = vunpack.c.l.b16 %v1567
    %v1662 = vunpack.c.l.b16 %v1568
    %v1663 = vunpack.c.l.b16 %v1569
    %v1664 = vunpack.c.l.b16 %v1570
    %v1665 = vunpack.c.l.b16 %v1571
    %v1666 = vunpack.c.l.b16 %v1572
    %v1667 = vunpack.c.l.b16 %v1573
    %v1668 = vunpack.c.l.b16 %v1574
    %v1669 = vpack.c.b16 %v1662, %v1661
    %v1670 = vpack.c.b16 %v1664, %v1663
    %v1671 = vpack.c.b16 %v1666, %v1665
    %v1672 = vpack.c.b16 %v1668, %v1667
    %v1678 = vsel %vm1608, %v1558, 0
    %1680 = vmatprep.subr.bf16.mxu0 0
    %1681 = vmatpush1.bf16.msra.mxu0 %v1669
    %1682 = vmatprep.subr.bf16.mxu0 0
    %1683 = vmatpush1.bf16.msra.mxu0 %v1670
    %1684 = vmatprep.subr.bf16.mxu0 0
    %1685 = vmatpush1.bf16.msra.mxu0 %v1671
    %1686 = vmatprep.subr.bf16.mxu0 0
    %1687 = vmatpush1.bf16.msra.mxu0 %v1672
    %1688 = vmatprep.subr.bf16.mxu0 0
    %1689 = vmatpush1.bf16.msra.mxu0 0
    %1690 = vmatprep.subr.bf16.mxu0 0
    %1691 = vmatpush1.bf16.msra.mxu0 0
    %1692 = vmatprep.subr.bf16.mxu0 0
    %1693 = vmatpush1.bf16.msra.mxu0 0
    %1694 = vmatprep.subr.bf16.mxu0 0
    %1695 = vmatpush1.bf16.msra.mxu0 0
    %1696 = vmatprep.subr.bf16.mxu0 0
    %1697 = vmatpush1.bf16.msra.mxu0 0
    %1698 = vmatprep.subr.bf16.mxu0 0
    %1699 = vmatpush1.bf16.msra.mxu0 0
    %1700 = vmatprep.subr.bf16.mxu0 0
    %1701 = vmatpush1.bf16.msra.mxu0 0
    %1702 = vmatprep.subr.bf16.mxu0 0
    %1703 = vmatpush1.bf16.msra.mxu0 0
    %1704 = vmatprep.subr.bf16.mxu0 0
    %1705 = vmatpush1.bf16.msra.mxu0 0
    %1706 = vmatprep.subr.bf16.mxu0 0
    %1707 = vmatpush1.bf16.msra.mxu0 0
    %1708 = vmatprep.subr.bf16.mxu0 0
    %1709 = vmatpush1.bf16.msra.mxu0 0
    %1710 = vmatprep.subr.bf16.mxu0 0
    %1711 = vmatpush1.bf16.msra.mxu0 0
    %1712 = vmatprep.mubr.bf16.mxu0 0
    %1713 = vmatmul.mubr.bf16.gmra.mrb[0].mxu0 %v1678
    %v1714 = vpop.f32.mrb[0].mxu0
    %v1715 = vadd.f32 %v1647, %v1714
    %v1716 = vpop.f32.mrb[0].mxu0
    %v1717 = vpop.f32.mrb[0].mxu0
    %v1718 = vadd.f32 %v1650, %v1717
    %v1719 = vpop.f32.mrb[0].mxu0
    %1720 = vdwg.mxu0
    %s1721 = scalar_lea.vmem [#allocation7], 64
    %v1722 = vld [vmem:[%s1721] sm:$0xf]
    %v1723 = vld [vmem:[%s1721 + $0x4] sm:$0xf]
    %v1724 = vld [vmem:[%s1721 + $0x8] sm:$0xf]
    %v1725 = vld [vmem:[%s1721 + $0xc] sm:$0xf]
    %v1726 = vld [vmem:[%s1721 + $0x10] sm:$0xf]
    %v1727 = vld [vmem:[%s1721 + $0x14] sm:$0xf]
    %v1728 = vld [vmem:[%s1721 + $0x18] sm:$0xf]
    %v1729 = vld [vmem:[%s1721 + $0x1c] sm:$0xf]
    %v1738 = vunpack.c.l.b16 %v1722
    %v1739 = vunpack.c.l.b16 %v1723
    %v1740 = vunpack.c.l.b16 %v1724
    %v1741 = vunpack.c.l.b16 %v1725
    %v1742 = vunpack.c.l.b16 %v1726
    %v1743 = vunpack.c.l.b16 %v1727
    %v1744 = vunpack.c.l.b16 %v1728
    %v1745 = vunpack.c.l.b16 %v1729
    %v1746 = vpack.c.b16 %v1739, %v1738
    %v1747 = vpack.c.b16 %v1741, %v1740
    %v1748 = vpack.c.b16 %v1743, %v1742
    %v1749 = vpack.c.b16 %v1745, %v1744
    %v1755 = vsel %vm1608, %v1560, 0
    %1757 = vmatprep.subr.bf16.mxu0 0
    %1758 = vmatpush1.bf16.msra.mxu0 %v1746
    %1759 = vmatprep.subr.bf16.mxu0 0
    %1760 = vmatpush1.bf16.msra.mxu0 %v1747
    %1761 = vmatprep.subr.bf16.mxu0 0
    %1762 = vmatpush1.bf16.msra.mxu0 %v1748
    %1763 = vmatprep.subr.bf16.mxu0 0
    %1764 = vmatpush1.bf16.msra.mxu0 %v1749
    %1765 = vmatprep.subr.bf16.mxu0 0
    %1766 = vmatpush1.bf16.msra.mxu0 0
    %1767 = vmatprep.subr.bf16.mxu0 0
    %1768 = vmatpush1.bf16.msra.mxu0 0
    %1769 = vmatprep.subr.bf16.mxu0 0
    %1770 = vmatpush1.bf16.msra.mxu0 0
    %1771 = vmatprep.subr.bf16.mxu0 0
    %1772 = vmatpush1.bf16.msra.mxu0 0
    %1773 = vmatprep.subr.bf16.mxu0 0
    %1774 = vmatpush1.bf16.msra.mxu0 0
    %1775 = vmatprep.subr.bf16.mxu0 0
    %1776 = vmatpush1.bf16.msra.mxu0 0
    %1777 = vmatprep.subr.bf16.mxu0 0
    %1778 = vmatpush1.bf16.msra.mxu0 0
    %1779 = vmatprep.subr.bf16.mxu0 0
    %1780 = vmatpush1.bf16.msra.mxu0 0
    %1781 = vmatprep.subr.bf16.mxu0 0
    %1782 = vmatpush1.bf16.msra.mxu0 0
    %1783 = vmatprep.subr.bf16.mxu0 0
    %1784 = vmatpush1.bf16.msra.mxu0 0
    %1785 = vmatprep.subr.bf16.mxu0 0
    %1786 = vmatpush1.bf16.msra.mxu0 0
    %1787 = vmatprep.subr.bf16.mxu0 0
    %1788 = vmatpush1.bf16.msra.mxu0 0
    %1789 = vmatprep.mubr.bf16.mxu0 0
    %1790 = vmatmul.mubr.bf16.gmra.mrb[0].mxu0 %v1755
    %v1791 = vpop.f32.mrb[0].mxu0
    %v1792 = vadd.f32 0.0, %v1791
    %v1793 = vpop.f32.mrb[0].mxu0
    %v1794 = vpop.f32.mrb[0].mxu0
    %v1795 = vadd.f32 0.0, %v1794
    %v1796 = vpop.f32.mrb[0].mxu0
    %1797 = vdwg.mxu0
    %v1798 = vadd.f32 %v1715, %v1792
    %v1799 = vadd.f32 %v1718, %v1795
    %s1800 = scalar_lea.vmem [#allocation7], 96
    %v1801 = vld [vmem:[%s1800] sm:$0xf]
    %v1802 = vld [vmem:[%s1800 + $0x4] sm:$0xf]
    %v1803 = vld [vmem:[%s1800 + $0x8] sm:$0xf]
    %v1804 = vld [vmem:[%s1800 + $0xc] sm:$0xf]
    %v1805 = vld [vmem:[%s1800 + $0x10] sm:$0xf]
    %v1806 = vld [vmem:[%s1800 + $0x14] sm:$0xf]
    %v1807 = vld [vmem:[%s1800 + $0x18] sm:$0xf]
    %v1808 = vld [vmem:[%s1800 + $0x1c] sm:$0xf]
    %v1817 = vunpack.c.l.b16 %v1801
    %v1818 = vunpack.c.l.b16 %v1802
    %v1819 = vunpack.c.l.b16 %v1803
    %v1820 = vunpack.c.l.b16 %v1804
    %v1821 = vunpack.c.l.b16 %v1805
    %v1822 = vunpack.c.l.b16 %v1806
    %v1823 = vunpack.c.l.b16 %v1807
    %v1824 = vunpack.c.l.b16 %v1808
    %v1825 = vpack.c.b16 %v1818, %v1817
    %v1826 = vpack.c.b16 %v1820, %v1819
    %v1827 = vpack.c.b16 %v1822, %v1821
    %v1828 = vpack.c.b16 %v1824, %v1823
    %v1834 = vsel %vm1608, %v1561, 0
    %1836 = vmatprep.subr.bf16.mxu0 0
    %1837 = vmatpush1.bf16.msra.mxu0 %v1825
    %1838 = vmatprep.subr.bf16.mxu0 0
    %1839 = vmatpush1.bf16.msra.mxu0 %v1826
    %1840 = vmatprep.subr.bf16.mxu0 0
    %1841 = vmatpush1.bf16.msra.mxu0 %v1827
    %1842 = vmatprep.subr.bf16.mxu0 0
    %1843 = vmatpush1.bf16.msra.mxu0 %v1828
    %1844 = vmatprep.subr.bf16.mxu0 0
    %1845 = vmatpush1.bf16.msra.mxu0 0
    %1846 = vmatprep.subr.bf16.mxu0 0
    %1847 = vmatpush1.bf16.msra.mxu0 0
    %1848 = vmatprep.subr.bf16.mxu0 0
    %1849 = vmatpush1.bf16.msra.mxu0 0
    %1850 = vmatprep.subr.bf16.mxu0 0
    %1851 = vmatpush1.bf16.msra.mxu0 0
    %1852 = vmatprep.subr.bf16.mxu0 0
    %1853 = vmatpush1.bf16.msra.mxu0 0
    %1854 = vmatprep.subr.bf16.mxu0 0
    %1855 = vmatpush1.bf16.msra.mxu0 0
    %1856 = vmatprep.subr.bf16.mxu0 0
    %1857 = vmatpush1.bf16.msra.mxu0 0
    %1858 = vmatprep.subr.bf16.mxu0 0
    %1859 = vmatpush1.bf16.msra.mxu0 0
    %1860 = vmatprep.subr.bf16.mxu0 0
    %1861 = vmatpush1.bf16.msra.mxu0 0
    %1862 = vmatprep.subr.bf16.mxu0 0
    %1863 = vmatpush1.bf16.msra.mxu0 0
    %1864 = vmatprep.subr.bf16.mxu0 0
    %1865 = vmatpush1.bf16.msra.mxu0 0
    %1866 = vmatprep.subr.bf16.mxu0 0
    %1867 = vmatpush1.bf16.msra.mxu0 0
    %1868 = vmatprep.mubr.bf16.mxu0 0
    %1869 = vmatmul.mubr.bf16.gmra.mrb[0].mxu0 %v1834
    %v1870 = vpop.f32.mrb[0].mxu0
    %v1871 = vadd.f32 0.0, %v1870
    %v1872 = vpop.f32.mrb[0].mxu0
    %v1873 = vpop.f32.mrb[0].mxu0
    %v1874 = vadd.f32 0.0, %v1873
    %v1875 = vpop.f32.mrb[0].mxu0
    %1876 = vdwg.mxu0
    %v1877 = vadd.f32 %v1798, %v1871
    %v1878 = vadd.f32 %v1799, %v1874
    %s1879 = scalar_lea.vmem [#allocation7], 128
    %v1880 = vld [vmem:[%s1879] sm:$0xf]
    %v1881 = vld [vmem:[%s1879 + $0x4] sm:$0xf]
    %v1882 = vld [vmem:[%s1879 + $0x8] sm:$0xf]
    %v1883 = vld [vmem:[%s1879 + $0xc] sm:$0xf]
    %v1884 = vld [vmem:[%s1879 + $0x10] sm:$0xf]
    %v1885 = vld [vmem:[%s1879 + $0x14] sm:$0xf]
    %v1886 = vld [vmem:[%s1879 + $0x18] sm:$0xf]
    %v1887 = vld [vmem:[%s1879 + $0x1c] sm:$0xf]
    %v1896 = vunpack.c.l.b16 %v1880
    %v1897 = vunpack.c.l.b16 %v1881
    %v1898 = vunpack.c.l.b16 %v1882
    %v1899 = vunpack.c.l.b16 %v1883
    %v1900 = vunpack.c.l.b16 %v1884
    %v1901 = vunpack.c.l.b16 %v1885
    %v1902 = vunpack.c.l.b16 %v1886
    %v1903 = vunpack.c.l.b16 %v1887
    %v1904 = vpack.c.b16 %v1897, %v1896
    %v1905 = vpack.c.b16 %v1899, %v1898
    %v1906 = vpack.c.b16 %v1901, %v1900
    %v1907 = vpack.c.b16 %v1903, %v1902
    %v1913 = vsel %vm1608, %v1562, 0
    %1915 = vmatprep.subr.bf16.mxu0 0
    %1916 = vmatpush1.bf16.msra.mxu0 %v1904
    %1917 = vmatprep.subr.bf16.mxu0 0
    %1918 = vmatpush1.bf16.msra.mxu0 %v1905
    %1919 = vmatprep.subr.bf16.mxu0 0
    %1920 = vmatpush1.bf16.msra.mxu0 %v1906
    %1921 = vmatprep.subr.bf16.mxu0 0
    %1922 = vmatpush1.bf16.msra.mxu0 %v1907
    %1923 = vmatprep.subr.bf16.mxu0 0
    %1924 = vmatpush1.bf16.msra.mxu0 0
    %1925 = vmatprep.subr.bf16.mxu0 0
    %1926 = vmatpush1.bf16.msra.mxu0 0
    %1927 = vmatprep.subr.bf16.mxu0 0
    %1928 = vmatpush1.bf16.msra.mxu0 0
    %1929 = vmatprep.subr.bf16.mxu0 0
    %1930 = vmatpush1.bf16.msra.mxu0 0
    %1931 = vmatprep.subr.bf16.mxu0 0
    %1932 = vmatpush1.bf16.msra.mxu0 0
    %1933 = vmatprep.subr.bf16.mxu0 0
    %1934 = vmatpush1.bf16.msra.mxu0 0
    %1935 = vmatprep.subr.bf16.mxu0 0
    %1936 = vmatpush1.bf16.msra.mxu0 0
    %1937 = vmatprep.subr.bf16.mxu0 0
    %1938 = vmatpush1.bf16.msra.mxu0 0
    %1939 = vmatprep.subr.bf16.mxu0 0
    %1940 = vmatpush1.bf16.msra.mxu0 0
    %1941 = vmatprep.subr.bf16.mxu0 0
    %1942 = vmatpush1.bf16.msra.mxu0 0
    %1943 = vmatprep.subr.bf16.mxu0 0
    %1944 = vmatpush1.bf16.msra.mxu0 0
    %1945 = vmatprep.subr.bf16.mxu0 0
    %1946 = vmatpush1.bf16.msra.mxu0 0
    %1947 = vmatprep.mubr.bf16.mxu0 0
    %1948 = vmatmul.mubr.bf16.gmra.mrb[0].mxu0 %v1913
    %v1949 = vpop.f32.mrb[0].mxu0
    %v1950 = vadd.f32 0.0, %v1949
    %v1951 = vpop.f32.mrb[0].mxu0
    %v1952 = vpop.f32.mrb[0].mxu0
    %v1953 = vadd.f32 0.0, %v1952
    %v1954 = vpop.f32.mrb[0].mxu0
    %1955 = vdwg.mxu0
    %v1956 = vadd.f32 %v1877, %v1950
    %v1957 = vadd.f32 %v1878, %v1953
    %s1958 = scalar_lea.vmem [#allocation7], 160
    %v1959 = vld [vmem:[%s1958] sm:$0xf]
    %v1960 = vld [vmem:[%s1958 + $0x4] sm:$0xf]
    %v1961 = vld [vmem:[%s1958 + $0x8] sm:$0xf]
    %v1962 = vld [vmem:[%s1958 + $0xc] sm:$0xf]
    %v1963 = vld [vmem:[%s1958 + $0x10] sm:$0xf]
    %v1964 = vld [vmem:[%s1958 + $0x14] sm:$0xf]
    %v1965 = vld [vmem:[%s1958 + $0x18] sm:$0xf]
    %v1966 = vld [vmem:[%s1958 + $0x1c] sm:$0xf]
    %v1975 = vunpack.c.l.b16 %v1959
    %v1976 = vunpack.c.l.b16 %v1960
    %v1977 = vunpack.c.l.b16 %v1961
    %v1978 = vunpack.c.l.b16 %v1962
    %v1979 = vunpack.c.l.b16 %v1963
    %v1980 = vunpack.c.l.b16 %v1964
    %v1981 = vunpack.c.l.b16 %v1965
    %v1982 = vunpack.c.l.b16 %v1966
    %v1983 = vpack.c.b16 %v1976, %v1975
    %v1984 = vpack.c.b16 %v1978, %v1977
    %v1985 = vpack.c.b16 %v1980, %v1979
    %v1986 = vpack.c.b16 %v1982, %v1981
    %v1992 = vsel %vm1608, %v1563, 0
    %1994 = vmatprep.subr.bf16.mxu0 0
    %1995 = vmatpush1.bf16.msra.mxu0 %v1983
    %1996 = vmatprep.subr.bf16.mxu0 0
    %1997 = vmatpush1.bf16.msra.mxu0 %v1984
    %1998 = vmatprep.subr.bf16.mxu0 0
    %1999 = vmatpush1.bf16.msra.mxu0 %v1985
    %2000 = vmatprep.subr.bf16.mxu0 0
    %2001 = vmatpush1.bf16.msra.mxu0 %v1986
    %2002 = vmatprep.subr.bf16.mxu0 0
    %2003 = vmatpush1.bf16.msra.mxu0 0
    %2004 = vmatprep.subr.bf16.mxu0 0
    %2005 = vmatpush1.bf16.msra.mxu0 0
    %2006 = vmatprep.subr.bf16.mxu0 0
    %2007 = vmatpush1.bf16.msra.mxu0 0
    %2008 = vmatprep.subr.bf16.mxu0 0
    %2009 = vmatpush1.bf16.msra.mxu0 0
    %2010 = vmatprep.subr.bf16.mxu0 0
    %2011 = vmatpush1.bf16.msra.mxu0 0
    %2012 = vmatprep.subr.bf16.mxu0 0
    %2013 = vmatpush1.bf16.msra.mxu0 0
    %2014 = vmatprep.subr.bf16.mxu0 0
    %2015 = vmatpush1.bf16.msra.mxu0 0
    %2016 = vmatprep.subr.bf16.mxu0 0
    %2017 = vmatpush1.bf16.msra.mxu0 0
    %2018 = vmatprep.subr.bf16.mxu0 0
    %2019 = vmatpush1.bf16.msra.mxu0 0
    %2020 = vmatprep.subr.bf16.mxu0 0
    %2021 = vmatpush1.bf16.msra.mxu0 0
    %2022 = vmatprep.subr.bf16.mxu0 0
    %2023 = vmatpush1.bf16.msra.mxu0 0
    %2024 = vmatprep.subr.bf16.mxu0 0
    %2025 = vmatpush1.bf16.msra.mxu0 0
    %2026 = vmatprep.mubr.bf16.mxu0 0
    %2027 = vmatmul.mubr.bf16.gmra.mrb[0].mxu0 %v1992
    %v2028 = vpop.f32.mrb[0].mxu0
    %v2029 = vadd.f32 0.0, %v2028
    %v2030 = vpop.f32.mrb[0].mxu0
    %v2031 = vpop.f32.mrb[0].mxu0
    %v2032 = vadd.f32 0.0, %v2031
    %v2033 = vpop.f32.mrb[0].mxu0
    %2034 = vdwg.mxu0
    %v2035 = vadd.f32 %v1956, %v2029
    %v2036 = vadd.f32 %v1957, %v2032
    %s2037 = scalar_lea.vmem [#allocation7], 192
    %v2038 = vld [vmem:[%s2037] sm:$0xf]
    %v2039 = vld [vmem:[%s2037 + $0x4] sm:$0xf]
    %v2040 = vld [vmem:[%s2037 + $0x8] sm:$0xf]
    %v2041 = vld [vmem:[%s2037 + $0xc] sm:$0xf]
    %v2042 = vld [vmem:[%s2037 + $0x10] sm:$0xf]
    %v2043 = vld [vmem:[%s2037 + $0x14] sm:$0xf]
    %v2044 = vld [vmem:[%s2037 + $0x18] sm:$0xf]
    %v2045 = vld [vmem:[%s2037 + $0x1c] sm:$0xf]
    %v2054 = vunpack.c.l.b16 %v2038
    %v2055 = vunpack.c.l.b16 %v2039
    %v2056 = vunpack.c.l.b16 %v2040
    %v2057 = vunpack.c.l.b16 %v2041
    %v2058 = vunpack.c.l.b16 %v2042
    %v2059 = vunpack.c.l.b16 %v2043
    %v2060 = vunpack.c.l.b16 %v2044
    %v2061 = vunpack.c.l.b16 %v2045
    %v2062 = vpack.c.b16 %v2055, %v2054
    %v2063 = vpack.c.b16 %v2057, %v2056
    %v2064 = vpack.c.b16 %v2059, %v2058
    %v2065 = vpack.c.b16 %v2061, %v2060
    %v2071 = vsel %vm1608, %v1564, 0
    %2073 = vmatprep.subr.bf16.mxu0 0
    %2074 = vmatpush1.bf16.msra.mxu0 %v2062
    %2075 = vmatprep.subr.bf16.mxu0 0
    %2076 = vmatpush1.bf16.msra.mxu0 %v2063
    %2077 = vmatprep.subr.bf16.mxu0 0
    %2078 = vmatpush1.bf16.msra.mxu0 %v2064
    %2079 = vmatprep.subr.bf16.mxu0 0
    %2080 = vmatpush1.bf16.msra.mxu0 %v2065
    %2081 = vmatprep.subr.bf16.mxu0 0
    %2082 = vmatpush1.bf16.msra.mxu0 0
    %2083 = vmatprep.subr.bf16.mxu0 0
    %2084 = vmatpush1.bf16.msra.mxu0 0
    %2085 = vmatprep.subr.bf16.mxu0 0
    %2086 = vmatpush1.bf16.msra.mxu0 0
    %2087 = vmatprep.subr.bf16.mxu0 0
    %2088 = vmatpush1.bf16.msra.mxu0 0
    %2089 = vmatprep.subr.bf16.mxu0 0
    %2090 = vmatpush1.bf16.msra.mxu0 0
    %2091 = vmatprep.subr.bf16.mxu0 0
    %2092 = vmatpush1.bf16.msra.mxu0 0
    %2093 = vmatprep.subr.bf16.mxu0 0
    %2094 = vmatpush1.bf16.msra.mxu0 0
    %2095 = vmatprep.subr.bf16.mxu0 0
    %2096 = vmatpush1.bf16.msra.mxu0 0
    %2097 = vmatprep.subr.bf16.mxu0 0
    %2098 = vmatpush1.bf16.msra.mxu0 0
    %2099 = vmatprep.subr.bf16.mxu0 0
    %2100 = vmatpush1.bf16.msra.mxu0 0
    %2101 = vmatprep.subr.bf16.mxu0 0
    %2102 = vmatpush1.bf16.msra.mxu0 0
    %2103 = vmatprep.subr.bf16.mxu0 0
    %2104 = vmatpush1.bf16.msra.mxu0 0
    %2105 = vmatprep.mubr.bf16.mxu0 0
    %2106 = vmatmul.mubr.bf16.gmra.mrb[0].mxu0 %v2071
    %v2107 = vpop.f32.mrb[0].mxu0
    %v2108 = vadd.f32 0.0, %v2107
    %v2109 = vpop.f32.mrb[0].mxu0
    %v2110 = vpop.f32.mrb[0].mxu0
    %v2111 = vadd.f32 0.0, %v2110
    %v2112 = vpop.f32.mrb[0].mxu0
    %2113 = vdwg.mxu0
    %v2114 = vadd.f32 %v2035, %v2108
    %v2115 = vadd.f32 %v2036, %v2111
    %s2116 = scalar_lea.vmem [#allocation7], 224
    %v2117 = vld [vmem:[%s2116] sm:$0xf]
    %v2118 = vld [vmem:[%s2116 + $0x4] sm:$0xf]
    %v2119 = vld [vmem:[%s2116 + $0x8] sm:$0xf]
    %v2120 = vld [vmem:[%s2116 + $0xc] sm:$0xf]
    %v2121 = vld [vmem:[%s2116 + $0x10] sm:$0xf]
    %v2122 = vld [vmem:[%s2116 + $0x14] sm:$0xf]
    %v2123 = vld [vmem:[%s2116 + $0x18] sm:$0xf]
    %v2124 = vld [vmem:[%s2116 + $0x1c] sm:$0xf]
    %v2133 = vunpack.c.l.b16 %v2117
    %v2134 = vunpack.c.l.b16 %v2118
    %v2135 = vunpack.c.l.b16 %v2119
    %v2136 = vunpack.c.l.b16 %v2120
    %v2137 = vunpack.c.l.b16 %v2121
    %v2138 = vunpack.c.l.b16 %v2122
    %v2139 = vunpack.c.l.b16 %v2123
    %v2140 = vunpack.c.l.b16 %v2124
    %v2141 = vpack.c.b16 %v2134, %v2133
    %v2142 = vpack.c.b16 %v2136, %v2135
    %v2143 = vpack.c.b16 %v2138, %v2137
    %v2144 = vpack.c.b16 %v2140, %v2139
    %v2150 = vsel %vm1608, %v1565, 0
    %2152 = vmatprep.subr.bf16.mxu0 0
    %2153 = vmatpush1.bf16.msra.mxu0 %v2141
    %2154 = vmatprep.subr.bf16.mxu0 0
    %2155 = vmatpush1.bf16.msra.mxu0 %v2142
    %2156 = vmatprep.subr.bf16.mxu0 0
    %2157 = vmatpush1.bf16.msra.mxu0 %v2143
    %2158 = vmatprep.subr.bf16.mxu0 0
    %2159 = vmatpush1.bf16.msra.mxu0 %v2144
    %2160 = vmatprep.subr.bf16.mxu0 0
    %2161 = vmatpush1.bf16.msra.mxu0 0
    %2162 = vmatprep.subr.bf16.mxu0 0
    %2163 = vmatpush1.bf16.msra.mxu0 0
    %2164 = vmatprep.subr.bf16.mxu0 0
    %2165 = vmatpush1.bf16.msra.mxu0 0
    %2166 = vmatprep.subr.bf16.mxu0 0
    %2167 = vmatpush1.bf16.msra.mxu0 0
    %2168 = vmatprep.subr.bf16.mxu0 0
    %2169 = vmatpush1.bf16.msra.mxu0 0
    %2170 = vmatprep.subr.bf16.mxu0 0
    %2171 = vmatpush1.bf16.msra.mxu0 0
    %2172 = vmatprep.subr.bf16.mxu0 0
    %2173 = vmatpush1.bf16.msra.mxu0 0
    %2174 = vmatprep.subr.bf16.mxu0 0
    %2175 = vmatpush1.bf16.msra.mxu0 0
    %2176 = vmatprep.subr.bf16.mxu0 0
    %2177 = vmatpush1.bf16.msra.mxu0 0
    %2178 = vmatprep.subr.bf16.mxu0 0
    %2179 = vmatpush1.bf16.msra.mxu0 0
    %2180 = vmatprep.subr.bf16.mxu0 0
    %2181 = vmatpush1.bf16.msra.mxu0 0
    %2182 = vmatprep.subr.bf16.mxu0 0
    %2183 = vmatpush1.bf16.msra.mxu0 0
    %2184 = vmatprep.mubr.bf16.mxu0 0
    %2185 = vmatmul.mubr.bf16.gmra.mrb[0].mxu0 %v2150
    %v2186 = vpop.f32.mrb[0].mxu0
    %v2187 = vadd.f32 0.0, %v2186
    %v2188 = vpop.f32.mrb[0].mxu0
    %v2189 = vpop.f32.mrb[0].mxu0
    %v2190 = vadd.f32 0.0, %v2189
    %v2191 = vpop.f32.mrb[0].mxu0
    %2192 = vdwg.mxu0
    %v2193 = vadd.f32 %v2114, %v2187
    %v2194 = vadd.f32 %v2115, %v2190
    %s2195 = scalar_lea.vmem [#allocation7], 256
    %v2196 = vld [vmem:[%s2195] sm:$0xf]
    %v2197 = vld [vmem:[%s2195 + $0x4] sm:$0xf]
    %v2198 = vld [vmem:[%s2195 + $0x8] sm:$0xf]
    %v2199 = vld [vmem:[%s2195 + $0xc] sm:$0xf]
    %v2200 = vld [vmem:[%s2195 + $0x10] sm:$0xf]
    %v2201 = vld [vmem:[%s2195 + $0x14] sm:$0xf]
    %v2202 = vld [vmem:[%s2195 + $0x18] sm:$0xf]
    %v2203 = vld [vmem:[%s2195 + $0x1c] sm:$0xf]
    %v2212 = vunpack.c.l.b16 %v2196
    %v2213 = vunpack.c.l.b16 %v2197
    %v2214 = vunpack.c.l.b16 %v2198
    %v2215 = vunpack.c.l.b16 %v2199
    %v2216 = vunpack.c.l.b16 %v2200
    %v2217 = vunpack.c.l.b16 %v2201
    %v2218 = vunpack.c.l.b16 %v2202
    %v2219 = vunpack.c.l.b16 %v2203
    %v2220 = vpack.c.b16 %v2213, %v2212
    %v2221 = vpack.c.b16 %v2215, %v2214
    %v2222 = vpack.c.b16 %v2217, %v2216
    %v2223 = vpack.c.b16 %v2219, %v2218
    %v2229 = vsel %vm1608, %v1566, 0
    %2231 = vmatprep.subr.bf16.mxu0 0
    %2232 = vmatpush1.bf16.msra.mxu0 %v2220
    %2233 = vmatprep.subr.bf16.mxu0 0
    %2234 = vmatpush1.bf16.msra.mxu0 %v2221
    %2235 = vmatprep.subr.bf16.mxu0 0
    %2236 = vmatpush1.bf16.msra.mxu0 %v2222
    %2237 = vmatprep.subr.bf16.mxu0 0
    %2238 = vmatpush1.bf16.msra.mxu0 %v2223
    %2239 = vmatprep.subr.bf16.mxu0 0
    %2240 = vmatpush1.bf16.msra.mxu0 0
    %2241 = vmatprep.subr.bf16.mxu0 0
    %2242 = vmatpush1.bf16.msra.mxu0 0
    %2243 = vmatprep.subr.bf16.mxu0 0
    %2244 = vmatpush1.bf16.msra.mxu0 0
    %2245 = vmatprep.subr.bf16.mxu0 0
    %2246 = vmatpush1.bf16.msra.mxu0 0
    %2247 = vmatprep.subr.bf16.mxu0 0
    %2248 = vmatpush1.bf16.msra.mxu0 0
    %2249 = vmatprep.subr.bf16.mxu0 0
    %2250 = vmatpush1.bf16.msra.mxu0 0
    %2251 = vmatprep.subr.bf16.mxu0 0
    %2252 = vmatpush1.bf16.msra.mxu0 0
    %2253 = vmatprep.subr.bf16.mxu0 0
    %2254 = vmatpush1.bf16.msra.mxu0 0
    %2255 = vmatprep.subr.bf16.mxu0 0
    %2256 = vmatpush1.bf16.msra.mxu0 0
    %2257 = vmatprep.subr.bf16.mxu0 0
    %2258 = vmatpush1.bf16.msra.mxu0 0
    %2259 = vmatprep.subr.bf16.mxu0 0
    %2260 = vmatpush1.bf16.msra.mxu0 0
    %2261 = vmatprep.subr.bf16.mxu0 0
    %2262 = vmatpush1.bf16.msra.mxu0 0
    %2263 = vmatprep.mubr.bf16.mxu0 0
    %2264 = vmatmul.mubr.bf16.gmra.mrb[0].mxu0 %v2229
    %v2265 = vpop.f32.mrb[0].mxu0
    %v2266 = vadd.f32 0.0, %v2265
    %v2267 = vpop.f32.mrb[0].mxu0
    %v2268 = vpop.f32.mrb[0].mxu0
    %v2269 = vadd.f32 0.0, %v2268
    %v2270 = vpop.f32.mrb[0].mxu0
    %2271 = vdwg.mxu0
    %v2272 = vadd.f32 %v2193, %v2266
    %v2273 = vadd.f32 %v2194, %v2269
    %v2274 = vld [vmem:[%s8] sm:$0x1]
    %v2276 = vlaneseq
    %v2277 = vshrl.u32 %v2276, 7
    %v2278 = vsub.s32 0, %v2277
    %v2279 = vrot.slane %v2274, %v2278
    %v2281 = vadd.f32 %v2272, %v2279
    %v2282 = vadd.f32 %v2273, %v2279
    %v2283 = vmax.f32 %v2281, 0.0
    %v2284 = vmax.f32 %v2282, 0.0
    %2285 = vst [vmem:[#allocation8] sm:$0xff] %v2283
    %2286 = vst [vmem:[#allocation8 + $0x8] sm:$0xff] %v2284
    // Predicated region
    $region50: #{tpu_custom_call.1} parent=1 // pred_check
      _
    $region51: #{tpu_custom_call.1} parent=1 // pred_check_branch
      %2288 = sbr.rel (0) target = $region53
    $region52: #{tpu_custom_call.1} parent=1 // pred_region
      %s2290 = ssub.s32 256, 256
      %2291 = vsyncadd [#allocation4], %s2290
      %s2292 = sshll.u32 [#allocation8], 4
      %s2293 = int_to_ptr.vmem [resolvable:$true] %s2292
      %2298 = dma.vmem_to_hbm [thread:$0]  %s2293, 256, %s9, [#allocation4], 128, 128, 8
    $region53: #{tpu_custom_call.1} parent=1 // pred_fallthru
      _
    // Predicated region
    $region54: #{tpu_custom_call.1} parent=1 // pred_check
      _
    $region55: #{tpu_custom_call.1} parent=1 // pred_check_branch
      %2300 = sbr.rel (0) target = $region57
    $region56: #{tpu_custom_call.1} parent=1 // pred_region
      %2301 = dma.done [#allocation4], 256
    $region57: #{tpu_custom_call.1} parent=1 // pred_fallthru
      _
    %2302 = vsyncpa [#allocation3], 1
    %2303 = vsyncpa [#allocation6], 1
    %2304 = vsyncpa [#allocation4], 1

</llo_original>
